<compile_context>
chip_gen: v6e
topology: v6e:2x2x1
jax: 0.10.0
libtpu: 0.0.40
codegen_flags: <defaults>
</compile_context>

<pallas_src>
import jax
import jax.numpy as jnp
from jax.experimental import pallas as pl
from jax.experimental.pallas import tpu as pltpu

COUT_PAD = 128  # lane-dense output width (one full vreg row; right on v5e/v6e/v7x)


# ----------------------------- Pallas kernel --------------------------------
def conv_matmul_kernel(p_ref, w_ref, b_ref, o_ref):
    # p_ref: (TM, Kpad) bf16 patch tile; w_ref: (Kpad, 128) bf16 (VMEM-resident);
    # b_ref: (1, 128) f32 (resident); o_ref: (TM, 128) bf16.
    acc = jnp.dot(p_ref[...], w_ref[...], preferred_element_type=jnp.float32)
    o_ref[...] = jnp.maximum(acc + b_ref[...], 0.0).astype(o_ref.dtype)  # bias+ReLU


def conv_relu_pallas(patches, w_t, bias_2d, *, tm):
    """patches: (Mpad, Kpad) bf16, w_t: (Kpad, 128) bf16, bias_2d: (1, 128) f32."""
    Mpad, Kpad = patches.shape
    cout_pad = w_t.shape[1]
    grid = (Mpad // tm,)
    cost = pl.CostEstimate(
        flops=2 * Mpad * Kpad * cout_pad,
        transcendentals=0,
        bytes_accessed=(Mpad * Kpad * 2            # bf16 patches read
                        + Kpad * cout_pad * 2      # bf16 weights read
                        + cout_pad * 4             # f32 bias read
                        + Mpad * cout_pad * 2),    # bf16 output write
    )
    return pl.pallas_call(
        conv_matmul_kernel,
        out_shape=jax.ShapeDtypeStruct((Mpad, cout_pad), jnp.bfloat16),
        grid_spec=pltpu.PrefetchScalarGridSpec(
            num_scalar_prefetch=0,
            grid=grid,
            in_specs=[
                pl.BlockSpec((tm, Kpad), lambda i: (i, 0)),
                # constant index_map -> weights/bias stay resident in VMEM
                pl.BlockSpec((Kpad, cout_pad), lambda i: (0, 0)),
                pl.BlockSpec((1, cout_pad), lambda i: (0, 0)),
            ],
            out_specs=pl.BlockSpec((tm, cout_pad), lambda i: (i, 0)),
        ),
        compiler_params=pltpu.CompilerParams(
            dimension_semantics=("parallel",),   # shard M tiles across TCs (v7x)
            vmem_limit_bytes=32 * 1024 * 1024,   # ~8.5 MiB actually used at TM=4096
        ),
        cost_estimate=cost,
    )(patches, w_t, bias_2d)


# ------------------------------- helpers -------------------------------------
def _round_up(x, m):
    return ((x + m - 1) // m) * m


def _tensorcores_per_chip():
    # v7x has 2 TensorCores per chip (megacore); v5e/v6e have 1.  Only used to
    # decide whether tiny problems are worth splitting into >=2 grid tiles.
    try:
        kind = jax.devices()[0].device_kind.lower()
    except Exception:
        return 1
    return 2 if "7" in kind else 1


def _choose_tm(m, *, max_tm=4096):
    # Big tiles amortize the ~0.35us/step pipeline overhead (review: 2-4K rows).
    # Small M: one tile on 1-TC chips (v5e/v6e); >=2 tiles on v7x so both
    # TensorCores get balanced work.  Always a multiple of 256.
    m_r = _round_up(m, 256)
    if m_r <= max_tm:
        if _tensorcores_per_chip() > 1 and m_r >= 512:
            return _round_up(pl.cdiv(m_r, 2), 256)
        return m_r
    return max_tm


# ------------------------------- wrapper -------------------------------------
@jax.jit
def alexnet_features1(x, weight, bias):
    """x: (N, 3, H, W) NCHW; weight: (64, 3, 11, 11); bias: (64,).
    Returns Conv2d(3,64,11,stride=4,pad=2) + ReLU as (N, 64, OH, OW) in bf16
    (bf16 operands/activations with f32 accumulation - documented inference
    precision choice)."""
    N, Cin, H, W = x.shape
    Cout, _, KH, KW = weight.shape
    stride, pad = 4, 2
    OH = (H + 2 * pad - KH) // stride + 1
    OW = (W + 2 * pad - KW) // stride + 1

    # Cast once BEFORE the ~7.6x im2col expansion; go NCHW->NHWC on the small
    # raw input (pre-expansion) so the expanded patches never need a transpose.
    xb = jnp.transpose(x.astype(jnp.bfloat16), (0, 2, 3, 1))         # (N,H,W,C)
    x_pad = jnp.pad(xb, ((0, 0), (pad, pad), (pad, pad), (0, 0)))    # (N,Hp,Wp,C)

    # im2col glue: strided window slices stacked as a TRAILING axis ->
    # (N, OH, OW, KH*KW, Cin); the reshape to (M, K) is contiguous (no big
    # transpose pass over the expanded matrix).
    slabs = []
    for kh in range(KH):
        for kw in range(KW):
            slabs.append(
                x_pad[:, kh:kh + OH * stride:stride, kw:kw + OW * stride:stride, :])
    patches = jnp.stack(slabs, axis=3)                    # (N,OH,OW,KH*KW,Cin)

    M = N * OH * OW
    K = KH * KW * Cin
    patches = patches.reshape(M, K)                       # bf16, K order (kh,kw,c)

    # Reorder the tiny weight tensor to the matching (kh, kw, c) K layout.
    w_t = jnp.transpose(weight.astype(jnp.bfloat16), (2, 3, 1, 0)).reshape(K, Cout)

    # Pad for clean TPU tiling: M to a TM multiple, K to 128, Cout to 128.
    TM = _choose_tm(M)
    Mpad = _round_up(M, TM)
    Kpad = _round_up(K, 128)
    patches_p = jnp.pad(patches, ((0, Mpad - M), (0, Kpad - K)))
    w_t_p = jnp.pad(w_t, ((0, Kpad - K), (0, COUT_PAD - Cout)))
    bias_2d = jnp.pad(bias.astype(jnp.float32),
                      (0, COUT_PAD - Cout)).reshape(1, COUT_PAD)

    out_flat = conv_relu_pallas(patches_p, w_t_p, bias_2d, tm=TM)  # (Mpad,128) bf16

    # NOTE: in a full AlexNet pipeline the next layer should consume the NHWC
    # (even the padded (Mpad,128)) buffer directly; the slice + NCHW transpose
    # below is kept only to preserve the PyTorch module's output layout.
    out = out_flat[:M, :Cout].reshape(N, OH, OW, Cout)
    return jnp.transpose(out, (0, 3, 1, 2))               # (N, Cout, OH, OW)


# --------------------------------- main ---------------------------------------
if __name__ == "__main__":
    key = jax.random.PRNGKey(0)
    k_x, k_w, k_b = jax.random.split(key, 3)

    # small shapes: batch=2, Cin=3 (required by the conv), spatial=63 -> OH=OW=15
    N, Cin, H, W = 2, 3, 63, 63
    Cout, KH, KW = 64, 11, 11

    x = jax.random.normal(k_x, (N, Cin, H, W), dtype=jnp.float32)
    fan_in = Cin * KH * KW
    weight = jax.random.normal(k_w, (Cout, Cin, KH, KW), dtype=jnp.float32) / jnp.sqrt(fan_in)
    bias = jax.random.normal(k_b, (Cout,), dtype=jnp.float32) * 0.01

    out = alexnet_features1(x, weight, bias)
    out = jax.block_until_ready(out)

    # sanity check against XLA's native conv on the same bf16-cast inputs
    # (the kernel uses bf16 operands, f32 accumulation, bf16 activations out)
    ref = jax.lax.conv_general_dilated(
        x.astype(jnp.bfloat16), weight.astype(jnp.bfloat16),
        window_strides=(4, 4), padding=((2, 2), (2, 2)),
        dimension_numbers=("NCHW", "OIHW", "NCHW"),
        preferred_element_type=jnp.float32)
    ref = jnp.maximum(ref + bias.reshape(1, Cout, 1, 1), 0.0)

    assert out.shape == (N, Cout, 15, 15), out.shape
    assert out.dtype == jnp.bfloat16, out.dtype
    err = float(jnp.max(jnp.abs(out.astype(jnp.float32) - ref)))
    assert jnp.allclose(out.astype(jnp.float32), ref, rtol=2e-2, atol=2e-2), err

    print("KERNEL_OK")
</pallas_src>

<mosaic_0001>
module attributes {stable_mosaic.version = 11 : i64} {
  func.func @conv_matmul_kernel(%arg0: i32, %arg1: memref<512x384xbf16, #tpu.memory_space<vmem>>, %arg2: memref<384x128xbf16, #tpu.memory_space<vmem>>, %arg3: memref<1x128xf32, #tpu.memory_space<vmem>>, %arg4: memref<512x128xbf16, #tpu.memory_space<vmem>>) attributes {dimension_semantics = [#tpu.dimension_semantics<parallel>], iteration_bounds = array<i64: 1>, scalar_prefetch = 0 : i64, scratch_operands = 0 : i64, tpu.core_type = #tpu.core_type<tc>, window_params = [{transform_indices = @transform_0, window_bounds = array<i64: 512, 384>}, {pipeline_mode = #tpu.pipeline_mode<synchronous>, transform_indices = @transform_1, window_bounds = array<i64: 384, 128>}, {pipeline_mode = #tpu.pipeline_mode<synchronous>, transform_indices = @transform_2, window_bounds = array<i64: 1, 128>}, {transform_indices = @transform_3, window_bounds = array<i64: 512, 128>}]} {
    %c0 = arith.constant 0 : index
    %c0_0 = arith.constant 0 : index
    %0 = vector.load %arg1[%c0, %c0_0] : memref<512x384xbf16, #tpu.memory_space<vmem>>, vector<512x384xbf16>
    %c0_1 = arith.constant 0 : index
    %c0_2 = arith.constant 0 : index
    %1 = vector.load %arg2[%c0_1, %c0_2] : memref<384x128xbf16, #tpu.memory_space<vmem>>, vector<384x128xbf16>
    %cst = arith.constant dense<0.000000e+00> : vector<512x128xf32>
    %2 = tpu.matmul %0, %1, %cst {dimension_numbers = #tpu.dot_dimension_numbers<[1], [0], [0], [1], [0, 0, 1, 1], [], []>} : vector<512x384xbf16>, vector<384x128xbf16>, vector<512x128xf32> -> vector<512x128xf32>
    %c0_3 = arith.constant 0 : index
    %c0_4 = arith.constant 0 : index
    %3 = vector.load %arg3[%c0_3, %c0_4] : memref<1x128xf32, #tpu.memory_space<vmem>>, vector<1x128xf32>
    %4 = vector.broadcast %3 : vector<1x128xf32> to vector<512x128xf32>
    %5 = arith.addf %2, %4 : vector<512x128xf32>
    %cst_5 = arith.constant 0.000000e+00 : f32
    %6 = vector.broadcast %cst_5 : f32 to vector<512x128xf32>
    %7 = arith.maximumf %5, %6 : vector<512x128xf32>
    %8 = arith.truncf %7 : vector<512x128xf32> to vector<512x128xbf16>
    %c0_6 = arith.constant 0 : index
    %c0_7 = arith.constant 0 : index
    %9 = vector.load %arg4[%c0_6, %c0_7] : memref<512x128xbf16, #tpu.memory_space<vmem>>, vector<512x128xbf16>
    tpu.vector_store %arg4[%c0_6, %c0_7], %8 {strides = array<i32>} : memref<512x128xbf16, #tpu.memory_space<vmem>>, vector<512x128xbf16>,
    return
  }
  func.func @transform_0(%arg0: i32) -> (i32, i32) {
    %c0_i32 = arith.constant 0 : i32
    %c0_i32_0 = arith.constant 0 : i32
    return %arg0, %c0_i32 : i32, i32
  }
  func.func @transform_1(%arg0: i32) -> (i32, i32) {
    %c0_i32 = arith.constant 0 : i32
    %c0_i32_0 = arith.constant 0 : i32
    %c0_i32_1 = arith.constant 0 : i32
    return %c0_i32, %c0_i32_0 : i32, i32
  }
  func.func @transform_2(%arg0: i32) -> (i32, i32) {
    %c0_i32 = arith.constant 0 : i32
    %c0_i32_0 = arith.constant 0 : i32
    %c0_i32_1 = arith.constant 0 : i32
    return %c0_i32, %c0_i32_0 : i32, i32
  }
  func.func @transform_3(%arg0: i32) -> (i32, i32) {
    %c0_i32 = arith.constant 0 : i32
    %c0_i32_0 = arith.constant 0 : i32
    return %arg0, %c0_i32 : i32, i32
  }
}

</mosaic_0001>

<llo_original>
// kernel: alexnet_features1.1
$region0: #{alexnet_features1.1}
  #allocation0 [shape = 'u32[]', space=smem, size = 0x4, offset = 0x4, fixed_abs, tag = 'smem constant byte address 0x4 - core index']
  #allocation1 [shape = 'u32[144,128]{1,0:T(1,128)}', space=vmem, size = 0x12000, scoped, tag = 'internal scratch']
  %s0 = inlined_call_operand.vmem [shape: bf16[512,384], index: 0, kind: input, shape index: {}]
  %s1 = inlined_call_operand.vmem [shape: bf16[384,128], index: 1, kind: input, shape index: {}]
  %s2 = inlined_call_operand.vmem [shape: f32[1,128], index: 2, kind: input, shape index: {}]
  %s3 = inlined_call_operand.vmem [shape: bf16[512,128], index: 3, kind: output, shape index: {}]
  %s4 = sld [smem:[#allocation0]]
  $region22: #{alexnet_features1.1} parent=0
    _
  %s6 = ssub.s32 1, %s4
  %s7 = scalar_select 0, %s6, %s4
  // Predicated region
  $region2: #{alexnet_features1.1} parent=0 // pred_check
    _
  $region3: #{alexnet_features1.1} parent=0 // pred_check_branch
    %9 = sbr.rel (0) target = $region5
  $region4: #{alexnet_features1.1} parent=0 // pred_region
    _
  $region5: #{alexnet_features1.1} parent=0 // pred_fallthru
    _
  // Predicated region
  $region6: #{alexnet_features1.1} parent=0 // pred_check
    _
  $region7: #{alexnet_features1.1} parent=0 // pred_check_branch
    %11 = sbr.rel (0) target = $region9
  $region8: #{alexnet_features1.1} parent=0 // pred_region
    _
  $region9: #{alexnet_features1.1} parent=0 // pred_fallthru
    _
  // Predicated region
  $region10: #{alexnet_features1.1} parent=0 // pred_check
    _
  $region11: #{alexnet_features1.1} parent=0 // pred_check_branch
    %13 = sbr.rel (0) target = $region13
  $region12: #{alexnet_features1.1} parent=0 // pred_region
    _
  $region13: #{alexnet_features1.1} parent=0 // pred_fallthru
    _
  %v15 = vld [vmem:[%s0] sm:$0xff]
  %v16 = vld [vmem:[%s0 + $0x8] sm:$0xf]
  %v17 = vld [vmem:[%s0 + $0xc] sm:$0xff]
  %v18 = vld [vmem:[%s0 + $0x14] sm:$0xf]
  %v19 = vld [vmem:[%s0 + $0x18] sm:$0xff]
  %v20 = vld [vmem:[%s0 + $0x20] sm:$0xf]
  %v21 = vld [vmem:[%s0 + $0x24] sm:$0xff]
  %v22 = vld [vmem:[%s0 + $0x2c] sm:$0xf]
  %v23 = vld [vmem:[%s0 + $0x30] sm:$0xff]
  %v24 = vld [vmem:[%s0 + $0x38] sm:$0xf]
  %v25 = vld [vmem:[%s0 + $0x3c] sm:$0xff]
  %v26 = vld [vmem:[%s0 + $0x44] sm:$0xf]
  %v27 = vld [vmem:[%s0 + $0x48] sm:$0xff]
  %v28 = vld [vmem:[%s0 + $0x50] sm:$0xf]
  %v29 = vld [vmem:[%s0 + $0x54] sm:$0xff]
  %v30 = vld [vmem:[%s0 + $0x5c] sm:$0xf]
  %v31 = vld [vmem:[%s0 + $0x60] sm:$0xff]
  %v32 = vld [vmem:[%s0 + $0x68] sm:$0xf]
  %v33 = vld [vmem:[%s0 + $0x6c] sm:$0xff]
  %v34 = vld [vmem:[%s0 + $0x74] sm:$0xf]
  %v35 = vld [vmem:[%s0 + $0x78] sm:$0xff]
  %v36 = vld [vmem:[%s0 + $0x80] sm:$0xf]
  %v37 = vld [vmem:[%s0 + $0x84] sm:$0xff]
  %v38 = vld [vmem:[%s0 + $0x8c] sm:$0xf]
  %v39 = vld [vmem:[%s0 + $0x90] sm:$0xff]
  %v40 = vld [vmem:[%s0 + $0x98] sm:$0xf]
  %v41 = vld [vmem:[%s0 + $0x9c] sm:$0xff]
  %v42 = vld [vmem:[%s0 + $0xa4] sm:$0xf]
  %v43 = vld [vmem:[%s0 + $0xa8] sm:$0xff]
  %v44 = vld [vmem:[%s0 + $0xb0] sm:$0xf]
  %v45 = vld [vmem:[%s0 + $0xb4] sm:$0xff]
  %v46 = vld [vmem:[%s0 + $0xbc] sm:$0xf]
  %v47 = vld [vmem:[%s0 + $0xc0] sm:$0xff]
  %v48 = vld [vmem:[%s0 + $0xc8] sm:$0xf]
  %v49 = vld [vmem:[%s0 + $0xcc] sm:$0xff]
  %v50 = vld [vmem:[%s0 + $0xd4] sm:$0xf]
  %v51 = vld [vmem:[%s0 + $0xd8] sm:$0xff]
  %v52 = vld [vmem:[%s0 + $0xe0] sm:$0xf]
  %v53 = vld [vmem:[%s0 + $0xe4] sm:$0xff]
  %v54 = vld [vmem:[%s0 + $0xec] sm:$0xf]
  %v55 = vld [vmem:[%s0 + $0xf0] sm:$0xff]
  %v56 = vld [vmem:[%s0 + $0xf8] sm:$0xf]
  %v57 = vld [vmem:[%s0 + $0xfc] sm:$0xff]
  %v58 = vld [vmem:[%s0 + $0x104] sm:$0xf]
  %v59 = vld [vmem:[%s0 + $0x108] sm:$0xff]
  %v60 = vld [vmem:[%s0 + $0x110] sm:$0xf]
  %v61 = vld [vmem:[%s0 + $0x114] sm:$0xff]
  %v62 = vld [vmem:[%s0 + $0x11c] sm:$0xf]
  %v63 = vld [vmem:[%s0 + $0x120] sm:$0xff]
  %v64 = vld [vmem:[%s0 + $0x128] sm:$0xf]
  %v65 = vld [vmem:[%s0 + $0x12c] sm:$0xff]
  %v66 = vld [vmem:[%s0 + $0x134] sm:$0xf]
  %v67 = vld [vmem:[%s0 + $0x138] sm:$0xff]
  %v68 = vld [vmem:[%s0 + $0x140] sm:$0xf]
  %v69 = vld [vmem:[%s0 + $0x144] sm:$0xff]
  %v70 = vld [vmem:[%s0 + $0x14c] sm:$0xf]
  %v71 = vld [vmem:[%s0 + $0x150] sm:$0xff]
  %v72 = vld [vmem:[%s0 + $0x158] sm:$0xf]
  %v73 = vld [vmem:[%s0 + $0x15c] sm:$0xff]
  %v74 = vld [vmem:[%s0 + $0x164] sm:$0xf]
  %v75 = vld [vmem:[%s0 + $0x168] sm:$0xff]
  %v76 = vld [vmem:[%s0 + $0x170] sm:$0xf]
  %v77 = vld [vmem:[%s0 + $0x174] sm:$0xff]
  %v78 = vld [vmem:[%s0 + $0x17c] sm:$0xf]
  %v79 = vld [vmem:[%s0 + $0x180] sm:$0xff]
  %v80 = vld [vmem:[%s0 + $0x188] sm:$0xf]
  %v81 = vld [vmem:[%s0 + $0x18c] sm:$0xff]
  %v82 = vld [vmem:[%s0 + $0x194] sm:$0xf]
  %v83 = vld [vmem:[%s0 + $0x198] sm:$0xff]
  %v84 = vld [vmem:[%s0 + $0x1a0] sm:$0xf]
  %v85 = vld [vmem:[%s0 + $0x1a4] sm:$0xff]
  %v86 = vld [vmem:[%s0 + $0x1ac] sm:$0xf]
  %v87 = vld [vmem:[%s0 + $0x1b0] sm:$0xff]
  %v88 = vld [vmem:[%s0 + $0x1b8] sm:$0xf]
  %v89 = vld [vmem:[%s0 + $0x1bc] sm:$0xff]
  %v90 = vld [vmem:[%s0 + $0x1c4] sm:$0xf]
  %v91 = vld [vmem:[%s0 + $0x1c8] sm:$0xff]
  %v92 = vld [vmem:[%s0 + $0x1d0] sm:$0xf]
  %v93 = vld [vmem:[%s0 + $0x1d4] sm:$0xff]
  %v94 = vld [vmem:[%s0 + $0x1dc] sm:$0xf]
  %v95 = vld [vmem:[%s0 + $0x1e0] sm:$0xff]
  %v96 = vld [vmem:[%s0 + $0x1e8] sm:$0xf]
  %v97 = vld [vmem:[%s0 + $0x1ec] sm:$0xff]
  %v98 = vld [vmem:[%s0 + $0x1f4] sm:$0xf]
  %v99 = vld [vmem:[%s0 + $0x1f8] sm:$0xff]
  %v100 = vld [vmem:[%s0 + $0x200] sm:$0xf]
  %v101 = vld [vmem:[%s0 + $0x204] sm:$0xff]
  %v102 = vld [vmem:[%s0 + $0x20c] sm:$0xf]
  %v103 = vld [vmem:[%s0 + $0x210] sm:$0xff]
  %v104 = vld [vmem:[%s0 + $0x218] sm:$0xf]
  %v105 = vld [vmem:[%s0 + $0x21c] sm:$0xff]
  %v106 = vld [vmem:[%s0 + $0x224] sm:$0xf]
  %v107 = vld [vmem:[%s0 + $0x228] sm:$0xff]
  %v108 = vld [vmem:[%s0 + $0x230] sm:$0xf]
  %v109 = vld [vmem:[%s0 + $0x234] sm:$0xff]
  %v110 = vld [vmem:[%s0 + $0x23c] sm:$0xf]
  %v111 = vld [vmem:[%s0 + $0x240] sm:$0xff]
  %v112 = vld [vmem:[%s0 + $0x248] sm:$0xf]
  %v113 = vld [vmem:[%s0 + $0x24c] sm:$0xff]
  %v114 = vld [vmem:[%s0 + $0x254] sm:$0xf]
  %v115 = vld [vmem:[%s0 + $0x258] sm:$0xff]
  %v116 = vld [vmem:[%s0 + $0x260] sm:$0xf]
  %v117 = vld [vmem:[%s0 + $0x264] sm:$0xff]
  %v118 = vld [vmem:[%s0 + $0x26c] sm:$0xf]
  %v119 = vld [vmem:[%s0 + $0x270] sm:$0xff]
  %v120 = vld [vmem:[%s0 + $0x278] sm:$0xf]
  %v121 = vld [vmem:[%s0 + $0x27c] sm:$0xff]
  %v122 = vld [vmem:[%s0 + $0x284] sm:$0xf]
  %v123 = vld [vmem:[%s0 + $0x288] sm:$0xff]
  %v124 = vld [vmem:[%s0 + $0x290] sm:$0xf]
  %v125 = vld [vmem:[%s0 + $0x294] sm:$0xff]
  %v126 = vld [vmem:[%s0 + $0x29c] sm:$0xf]
  %v127 = vld [vmem:[%s0 + $0x2a0] sm:$0xff]
  %v128 = vld [vmem:[%s0 + $0x2a8] sm:$0xf]
  %v129 = vld [vmem:[%s0 + $0x2ac] sm:$0xff]
  %v130 = vld [vmem:[%s0 + $0x2b4] sm:$0xf]
  %v131 = vld [vmem:[%s0 + $0x2b8] sm:$0xff]
  %v132 = vld [vmem:[%s0 + $0x2c0] sm:$0xf]
  %v133 = vld [vmem:[%s0 + $0x2c4] sm:$0xff]
  %v134 = vld [vmem:[%s0 + $0x2cc] sm:$0xf]
  %v135 = vld [vmem:[%s0 + $0x2d0] sm:$0xff]
  %v136 = vld [vmem:[%s0 + $0x2d8] sm:$0xf]
  %v137 = vld [vmem:[%s0 + $0x2dc] sm:$0xff]
  %v138 = vld [vmem:[%s0 + $0x2e4] sm:$0xf]
  %v139 = vld [vmem:[%s0 + $0x2e8] sm:$0xff]
  %v140 = vld [vmem:[%s0 + $0x2f0] sm:$0xf]
  %v141 = vld [vmem:[%s0 + $0x2f4] sm:$0xff]
  %v142 = vld [vmem:[%s0 + $0x2fc] sm:$0xf]
  %v143 = vld [vmem:[%s1] sm:$0xf]
  %v144 = vld [vmem:[%s1 + $0x4] sm:$0xf]
  %v145 = vld [vmem:[%s1 + $0x8] sm:$0xf]
  %v146 = vld [vmem:[%s1 + $0xc] sm:$0xf]
  %v147 = vld [vmem:[%s1 + $0x10] sm:$0xf]
  %v148 = vld [vmem:[%s1 + $0x14] sm:$0xf]
  %v149 = vld [vmem:[%s1 + $0x18] sm:$0xf]
  %v150 = vld [vmem:[%s1 + $0x1c] sm:$0xf]
  %v151 = vld [vmem:[%s1 + $0x20] sm:$0xf]
  %v152 = vld [vmem:[%s1 + $0x24] sm:$0xf]
  %v153 = vld [vmem:[%s1 + $0x28] sm:$0xf]
  %v154 = vld [vmem:[%s1 + $0x2c] sm:$0xf]
  %v155 = vld [vmem:[%s1 + $0x30] sm:$0xf]
  %v156 = vld [vmem:[%s1 + $0x34] sm:$0xf]
  %v157 = vld [vmem:[%s1 + $0x38] sm:$0xf]
  %v158 = vld [vmem:[%s1 + $0x3c] sm:$0xf]
  %v159 = vld [vmem:[%s1 + $0x40] sm:$0xf]
  %v160 = vld [vmem:[%s1 + $0x44] sm:$0xf]
  %v161 = vld [vmem:[%s1 + $0x48] sm:$0xf]
  %v162 = vld [vmem:[%s1 + $0x4c] sm:$0xf]
  %v163 = vld [vmem:[%s1 + $0x50] sm:$0xf]
  %v164 = vld [vmem:[%s1 + $0x54] sm:$0xf]
  %v165 = vld [vmem:[%s1 + $0x58] sm:$0xf]
  %v166 = vld [vmem:[%s1 + $0x5c] sm:$0xf]
  %v167 = vld [vmem:[%s1 + $0x60] sm:$0xf]
  %v168 = vld [vmem:[%s1 + $0x64] sm:$0xf]
  %v169 = vld [vmem:[%s1 + $0x68] sm:$0xf]
  %v170 = vld [vmem:[%s1 + $0x6c] sm:$0xf]
  %v171 = vld [vmem:[%s1 + $0x70] sm:$0xf]
  %v172 = vld [vmem:[%s1 + $0x74] sm:$0xf]
  %v173 = vld [vmem:[%s1 + $0x78] sm:$0xf]
  %v174 = vld [vmem:[%s1 + $0x7c] sm:$0xf]
  %v175 = vld [vmem:[%s1 + $0x80] sm:$0xf]
  %v176 = vld [vmem:[%s1 + $0x84] sm:$0xf]
  %v177 = vld [vmem:[%s1 + $0x88] sm:$0xf]
  %v178 = vld [vmem:[%s1 + $0x8c] sm:$0xf]
  %v179 = vld [vmem:[%s1 + $0x90] sm:$0xf]
  %v180 = vld [vmem:[%s1 + $0x94] sm:$0xf]
  %v181 = vld [vmem:[%s1 + $0x98] sm:$0xf]
  %v182 = vld [vmem:[%s1 + $0x9c] sm:$0xf]
  %v183 = vld [vmem:[%s1 + $0xa0] sm:$0xf]
  %v184 = vld [vmem:[%s1 + $0xa4] sm:$0xf]
  %v185 = vld [vmem:[%s1 + $0xa8] sm:$0xf]
  %v186 = vld [vmem:[%s1 + $0xac] sm:$0xf]
  %v187 = vld [vmem:[%s1 + $0xb0] sm:$0xf]
  %v188 = vld [vmem:[%s1 + $0xb4] sm:$0xf]
  %v189 = vld [vmem:[%s1 + $0xb8] sm:$0xf]
  %v190 = vld [vmem:[%s1 + $0xbc] sm:$0xf]
  %v191 = vld [vmem:[%s2] sm:$0x1]
  %v193 = vlaneseq
  %v194 = vshrl.u32 %v193, 7
  %v195 = vsub.s32 0, %v194
  %v196 = vrot.slane %v191, %v195
  %v326 = vunpack.c.l.b16 %v15
  %v327 = vunpack.c.h.b16 %v15
  %v328 = vunpack.c.l.b16 %v16
  %v329 = vunpack.c.l.b16 %v17
  %v330 = vunpack.c.h.b16 %v17
  %v331 = vunpack.c.l.b16 %v18
  %v332 = vunpack.c.l.b16 %v19
  %v333 = vunpack.c.h.b16 %v19
  %v334 = vunpack.c.l.b16 %v20
  %v335 = vunpack.c.l.b16 %v21
  %v336 = vunpack.c.h.b16 %v21
  %v337 = vunpack.c.l.b16 %v22
  %v338 = vunpack.c.l.b16 %v23
  %v339 = vunpack.c.h.b16 %v23
  %v340 = vunpack.c.l.b16 %v24
  %v341 = vunpack.c.l.b16 %v25
  %v342 = vunpack.c.h.b16 %v25
  %v343 = vunpack.c.l.b16 %v26
  %v344 = vunpack.c.l.b16 %v27
  %v345 = vunpack.c.h.b16 %v27
  %v346 = vunpack.c.l.b16 %v28
  %v347 = vunpack.c.l.b16 %v29
  %v348 = vunpack.c.h.b16 %v29
  %v349 = vunpack.c.l.b16 %v30
  %v350 = vunpack.c.l.b16 %v31
  %v351 = vunpack.c.h.b16 %v31
  %v352 = vunpack.c.l.b16 %v32
  %v353 = vunpack.c.l.b16 %v33
  %v354 = vunpack.c.h.b16 %v33
  %v355 = vunpack.c.l.b16 %v34
  %v356 = vunpack.c.l.b16 %v35
  %v357 = vunpack.c.h.b16 %v35
  %v358 = vunpack.c.l.b16 %v36
  %v359 = vunpack.c.l.b16 %v37
  %v360 = vunpack.c.h.b16 %v37
  %v361 = vunpack.c.l.b16 %v38
  %v362 = vunpack.c.l.b16 %v39
  %v363 = vunpack.c.h.b16 %v39
  %v364 = vunpack.c.l.b16 %v40
  %v365 = vunpack.c.l.b16 %v41
  %v366 = vunpack.c.h.b16 %v41
  %v367 = vunpack.c.l.b16 %v42
  %v368 = vunpack.c.l.b16 %v43
  %v369 = vunpack.c.h.b16 %v43
  %v370 = vunpack.c.l.b16 %v44
  %v371 = vunpack.c.l.b16 %v45
  %v372 = vunpack.c.h.b16 %v45
  %v373 = vunpack.c.l.b16 %v46
  %v374 = vunpack.c.l.b16 %v47
  %v375 = vunpack.c.h.b16 %v47
  %v376 = vunpack.c.l.b16 %v48
  %v377 = vunpack.c.l.b16 %v49
  %v378 = vunpack.c.h.b16 %v49
  %v379 = vunpack.c.l.b16 %v50
  %v380 = vunpack.c.l.b16 %v51
  %v381 = vunpack.c.h.b16 %v51
  %v382 = vunpack.c.l.b16 %v52
  %v383 = vunpack.c.l.b16 %v53
  %v384 = vunpack.c.h.b16 %v53
  %v385 = vunpack.c.l.b16 %v54
  %v386 = vunpack.c.l.b16 %v55
  %v387 = vunpack.c.h.b16 %v55
  %v388 = vunpack.c.l.b16 %v56
  %v389 = vunpack.c.l.b16 %v57
  %v390 = vunpack.c.h.b16 %v57
  %v391 = vunpack.c.l.b16 %v58
  %v392 = vunpack.c.l.b16 %v59
  %v393 = vunpack.c.h.b16 %v59
  %v394 = vunpack.c.l.b16 %v60
  %v395 = vunpack.c.l.b16 %v61
  %v396 = vunpack.c.h.b16 %v61
  %v397 = vunpack.c.l.b16 %v62
  %v398 = vunpack.c.l.b16 %v63
  %v399 = vunpack.c.h.b16 %v63
  %v400 = vunpack.c.l.b16 %v64
  %v401 = vunpack.c.l.b16 %v65
  %v402 = vunpack.c.h.b16 %v65
  %v403 = vunpack.c.l.b16 %v66
  %v404 = vunpack.c.l.b16 %v67
  %v405 = vunpack.c.h.b16 %v67
  %v406 = vunpack.c.l.b16 %v68
  %v407 = vunpack.c.l.b16 %v69
  %v408 = vunpack.c.h.b16 %v69
  %v409 = vunpack.c.l.b16 %v70
  %v410 = vunpack.c.l.b16 %v71
  %v411 = vunpack.c.h.b16 %v71
  %v412 = vunpack.c.l.b16 %v72
  %v413 = vunpack.c.l.b16 %v73
  %v414 = vunpack.c.h.b16 %v73
  %v415 = vunpack.c.l.b16 %v74
  %v416 = vunpack.c.l.b16 %v75
  %v417 = vunpack.c.h.b16 %v75
  %v418 = vunpack.c.l.b16 %v76
  %v419 = vunpack.c.l.b16 %v77
  %v420 = vunpack.c.h.b16 %v77
  %v421 = vunpack.c.l.b16 %v78
  %v422 = vunpack.c.l.b16 %v79
  %v423 = vunpack.c.h.b16 %v79
  %v424 = vunpack.c.l.b16 %v80
  %v425 = vunpack.c.l.b16 %v81
  %v426 = vunpack.c.h.b16 %v81
  %v427 = vunpack.c.l.b16 %v82
  %v428 = vunpack.c.l.b16 %v83
  %v429 = vunpack.c.h.b16 %v83
  %v430 = vunpack.c.l.b16 %v84
  %v431 = vunpack.c.l.b16 %v85
  %v432 = vunpack.c.h.b16 %v85
  %v433 = vunpack.c.l.b16 %v86
  %v434 = vunpack.c.l.b16 %v87
  %v435 = vunpack.c.h.b16 %v87
  %v436 = vunpack.c.l.b16 %v88
  %v437 = vunpack.c.l.b16 %v89
  %v438 = vunpack.c.h.b16 %v89
  %v439 = vunpack.c.l.b16 %v90
  %v440 = vunpack.c.l.b16 %v91
  %v441 = vunpack.c.h.b16 %v91
  %v442 = vunpack.c.l.b16 %v92
  %v443 = vunpack.c.l.b16 %v93
  %v444 = vunpack.c.h.b16 %v93
  %v445 = vunpack.c.l.b16 %v94
  %v446 = vunpack.c.l.b16 %v95
  %v447 = vunpack.c.h.b16 %v95
  %v448 = vunpack.c.l.b16 %v96
  %v449 = vunpack.c.l.b16 %v97
  %v450 = vunpack.c.h.b16 %v97
  %v451 = vunpack.c.l.b16 %v98
  %v452 = vunpack.c.l.b16 %v99
  %v453 = vunpack.c.h.b16 %v99
  %v454 = vunpack.c.l.b16 %v100
  %v455 = vunpack.c.l.b16 %v101
  %v456 = vunpack.c.h.b16 %v101
  %v457 = vunpack.c.l.b16 %v102
  %v458 = vunpack.c.l.b16 %v103
  %v459 = vunpack.c.h.b16 %v103
  %v460 = vunpack.c.l.b16 %v104
  %v461 = vunpack.c.l.b16 %v105
  %v462 = vunpack.c.h.b16 %v105
  %v463 = vunpack.c.l.b16 %v106
  %v464 = vunpack.c.l.b16 %v107
  %v465 = vunpack.c.h.b16 %v107
  %v466 = vunpack.c.l.b16 %v108
  %v467 = vunpack.c.l.b16 %v109
  %v468 = vunpack.c.h.b16 %v109
  %v469 = vunpack.c.l.b16 %v110
  %v470 = vunpack.c.l.b16 %v111
  %v471 = vunpack.c.h.b16 %v111
  %v472 = vunpack.c.l.b16 %v112
  %v473 = vunpack.c.l.b16 %v113
  %v474 = vunpack.c.h.b16 %v113
  %v475 = vunpack.c.l.b16 %v114
  %v476 = vunpack.c.l.b16 %v115
  %v477 = vunpack.c.h.b16 %v115
  %v478 = vunpack.c.l.b16 %v116
  %v479 = vunpack.c.l.b16 %v117
  %v480 = vunpack.c.h.b16 %v117
  %v481 = vunpack.c.l.b16 %v118
  %v482 = vunpack.c.l.b16 %v119
  %v483 = vunpack.c.h.b16 %v119
  %v484 = vunpack.c.l.b16 %v120
  %v485 = vunpack.c.l.b16 %v121
  %v486 = vunpack.c.h.b16 %v121
  %v487 = vunpack.c.l.b16 %v122
  %v488 = vunpack.c.l.b16 %v123
  %v489 = vunpack.c.h.b16 %v123
  %v490 = vunpack.c.l.b16 %v124
  %v491 = vunpack.c.l.b16 %v125
  %v492 = vunpack.c.h.b16 %v125
  %v493 = vunpack.c.l.b16 %v126
  %v494 = vunpack.c.l.b16 %v127
  %v495 = vunpack.c.h.b16 %v127
  %v496 = vunpack.c.l.b16 %v128
  %v497 = vunpack.c.l.b16 %v129
  %v498 = vunpack.c.h.b16 %v129
  %v499 = vunpack.c.l.b16 %v130
  %v500 = vunpack.c.l.b16 %v131
  %v501 = vunpack.c.h.b16 %v131
  %v502 = vunpack.c.l.b16 %v132
  %v503 = vunpack.c.l.b16 %v133
  %v504 = vunpack.c.h.b16 %v133
  %v505 = vunpack.c.l.b16 %v134
  %v506 = vunpack.c.l.b16 %v135
  %v507 = vunpack.c.h.b16 %v135
  %v508 = vunpack.c.l.b16 %v136
  %v509 = vunpack.c.l.b16 %v137
  %v510 = vunpack.c.h.b16 %v137
  %v511 = vunpack.c.l.b16 %v138
  %v512 = vunpack.c.l.b16 %v139
  %v513 = vunpack.c.h.b16 %v139
  %v514 = vunpack.c.l.b16 %v140
  %v515 = vunpack.c.l.b16 %v141
  %v516 = vunpack.c.h.b16 %v141
  %v517 = vunpack.c.l.b16 %v142
  %v518 = vpack.c.b16 %v329, %v326
  %v519 = vpack.c.b16 %v330, %v327
  %v520 = vpack.c.b16 %v331, %v328
  %v521 = vpack.c.b16 %v335, %v332
  %v522 = vpack.c.b16 %v336, %v333
  %v523 = vpack.c.b16 %v337, %v334
  %v524 = vpack.c.b16 %v341, %v338
  %v525 = vpack.c.b16 %v342, %v339
  %v526 = vpack.c.b16 %v343, %v340
  %v527 = vpack.c.b16 %v347, %v344
  %v528 = vpack.c.b16 %v348, %v345
  %v529 = vpack.c.b16 %v349, %v346
  %v530 = vpack.c.b16 %v353, %v350
  %v531 = vpack.c.b16 %v354, %v351
  %v532 = vpack.c.b16 %v355, %v352
  %v533 = vpack.c.b16 %v359, %v356
  %v534 = vpack.c.b16 %v360, %v357
  %v535 = vpack.c.b16 %v361, %v358
  %v536 = vpack.c.b16 %v365, %v362
  %v537 = vpack.c.b16 %v366, %v363
  %v538 = vpack.c.b16 %v367, %v364
  %v539 = vpack.c.b16 %v371, %v368
  %v540 = vpack.c.b16 %v372, %v369
  %v541 = vpack.c.b16 %v373, %v370
  %v542 = vpack.c.b16 %v377, %v374
  %v543 = vpack.c.b16 %v378, %v375
  %v544 = vpack.c.b16 %v379, %v376
  %v545 = vpack.c.b16 %v383, %v380
  %v546 = vpack.c.b16 %v384, %v381
  %v547 = vpack.c.b16 %v385, %v382
  %v548 = vpack.c.b16 %v389, %v386
  %v549 = vpack.c.b16 %v390, %v387
  %v550 = vpack.c.b16 %v391, %v388
  %v551 = vpack.c.b16 %v395, %v392
  %v552 = vpack.c.b16 %v396, %v393
  %v553 = vpack.c.b16 %v397, %v394
  %v554 = vpack.c.b16 %v401, %v398
  %v555 = vpack.c.b16 %v402, %v399
  %v556 = vpack.c.b16 %v403, %v400
  %v557 = vpack.c.b16 %v407, %v404
  %v558 = vpack.c.b16 %v408, %v405
  %v559 = vpack.c.b16 %v409, %v406
  %v560 = vpack.c.b16 %v413, %v410
  %v561 = vpack.c.b16 %v414, %v411
  %v562 = vpack.c.b16 %v415, %v412
  %v563 = vpack.c.b16 %v419, %v416
  %v564 = vpack.c.b16 %v420, %v417
  %v565 = vpack.c.b16 %v421, %v418
  %v566 = vpack.c.b16 %v425, %v422
  %v567 = vpack.c.b16 %v426, %v423
  %v568 = vpack.c.b16 %v427, %v424
  %v569 = vpack.c.b16 %v431, %v428
  %v570 = vpack.c.b16 %v432, %v429
  %v571 = vpack.c.b16 %v433, %v430
  %v572 = vpack.c.b16 %v437, %v434
  %v573 = vpack.c.b16 %v438, %v435
  %v574 = vpack.c.b16 %v439, %v436
  %v575 = vpack.c.b16 %v443, %v440
  %v576 = vpack.c.b16 %v444, %v441
  %v577 = vpack.c.b16 %v445, %v442
  %v578 = vpack.c.b16 %v449, %v446
  %v579 = vpack.c.b16 %v450, %v447
  %v580 = vpack.c.b16 %v451, %v448
  %v581 = vpack.c.b16 %v455, %v452
  %v582 = vpack.c.b16 %v456, %v453
  %v583 = vpack.c.b16 %v457, %v454
  %v584 = vpack.c.b16 %v461, %v458
  %v585 = vpack.c.b16 %v462, %v459
  %v586 = vpack.c.b16 %v463, %v460
  %v587 = vpack.c.b16 %v467, %v464
  %v588 = vpack.c.b16 %v468, %v465
  %v589 = vpack.c.b16 %v469, %v466
  %v590 = vpack.c.b16 %v473, %v470
  %v591 = vpack.c.b16 %v474, %v471
  %v592 = vpack.c.b16 %v475, %v472
  %v593 = vpack.c.b16 %v479, %v476
  %v594 = vpack.c.b16 %v480, %v477
  %v595 = vpack.c.b16 %v481, %v478
  %v596 = vpack.c.b16 %v485, %v482
  %v597 = vpack.c.b16 %v486, %v483
  %v598 = vpack.c.b16 %v487, %v484
  %v599 = vpack.c.b16 %v491, %v488
  %v600 = vpack.c.b16 %v492, %v489
  %v601 = vpack.c.b16 %v493, %v490
  %v602 = vpack.c.b16 %v497, %v494
  %v603 = vpack.c.b16 %v498, %v495
  %v604 = vpack.c.b16 %v499, %v496
  %v605 = vpack.c.b16 %v503, %v500
  %v606 = vpack.c.b16 %v504, %v501
  %v607 = vpack.c.b16 %v505, %v502
  %v608 = vpack.c.b16 %v509, %v506
  %v609 = vpack.c.b16 %v510, %v507
  %v610 = vpack.c.b16 %v511, %v508
  %v611 = vpack.c.b16 %v515, %v512
  %v612 = vpack.c.b16 %v516, %v513
  %v613 = vpack.c.b16 %v517, %v514
  %v758 = vunpack.c.l.b16 %v143
  %v759 = vunpack.c.l.b16 %v144
  %v760 = vunpack.c.l.b16 %v145
  %v761 = vunpack.c.l.b16 %v146
  %v762 = vunpack.c.l.b16 %v147
  %v763 = vunpack.c.l.b16 %v148
  %v764 = vunpack.c.l.b16 %v149
  %v765 = vunpack.c.l.b16 %v150
  %v766 = vunpack.c.l.b16 %v151
  %v767 = vunpack.c.l.b16 %v152
  %v768 = vunpack.c.l.b16 %v153
  %v769 = vunpack.c.l.b16 %v154
  %v770 = vunpack.c.l.b16 %v155
  %v771 = vunpack.c.l.b16 %v156
  %v772 = vunpack.c.l.b16 %v157
  %v773 = vunpack.c.l.b16 %v158
  %v774 = vunpack.c.l.b16 %v159
  %v775 = vunpack.c.l.b16 %v160
  %v776 = vunpack.c.l.b16 %v161
  %v777 = vunpack.c.l.b16 %v162
  %v778 = vunpack.c.l.b16 %v163
  %v779 = vunpack.c.l.b16 %v164
  %v780 = vunpack.c.l.b16 %v165
  %v781 = vunpack.c.l.b16 %v166
  %v782 = vunpack.c.l.b16 %v167
  %v783 = vunpack.c.l.b16 %v168
  %v784 = vunpack.c.l.b16 %v169
  %v785 = vunpack.c.l.b16 %v170
  %v786 = vunpack.c.l.b16 %v171
  %v787 = vunpack.c.l.b16 %v172
  %v788 = vunpack.c.l.b16 %v173
  %v789 = vunpack.c.l.b16 %v174
  %v790 = vunpack.c.l.b16 %v175
  %v791 = vunpack.c.l.b16 %v176
  %v792 = vunpack.c.l.b16 %v177
  %v793 = vunpack.c.l.b16 %v178
  %v794 = vunpack.c.l.b16 %v179
  %v795 = vunpack.c.l.b16 %v180
  %v796 = vunpack.c.l.b16 %v181
  %v797 = vunpack.c.l.b16 %v182
  %v798 = vunpack.c.l.b16 %v183
  %v799 = vunpack.c.l.b16 %v184
  %v800 = vunpack.c.l.b16 %v185
  %v801 = vunpack.c.l.b16 %v186
  %v802 = vunpack.c.l.b16 %v187
  %v803 = vunpack.c.l.b16 %v188
  %v804 = vunpack.c.l.b16 %v189
  %v805 = vunpack.c.l.b16 %v190
  %v806 = vpack.c.b16 %v759, %v758
  %v807 = vpack.c.b16 %v761, %v760
  %v808 = vpack.c.b16 %v763, %v762
  %v809 = vpack.c.b16 %v765, %v764
  %v810 = vpack.c.b16 %v767, %v766
  %v811 = vpack.c.b16 %v769, %v768
  %v812 = vpack.c.b16 %v771, %v770
  %v813 = vpack.c.b16 %v773, %v772
  %v814 = vpack.c.b16 %v775, %v774
  %v815 = vpack.c.b16 %v777, %v776
  %v816 = vpack.c.b16 %v779, %v778
  %v817 = vpack.c.b16 %v781, %v780
  %v818 = vpack.c.b16 %v783, %v782
  %v819 = vpack.c.b16 %v785, %v784
  %v820 = vpack.c.b16 %v787, %v786
  %v821 = vpack.c.b16 %v789, %v788
  %v822 = vpack.c.b16 %v791, %v790
  %v823 = vpack.c.b16 %v793, %v792
  %v824 = vpack.c.b16 %v795, %v794
  %v825 = vpack.c.b16 %v797, %v796
  %v826 = vpack.c.b16 %v799, %v798
  %v827 = vpack.c.b16 %v801, %v800
  %v828 = vpack.c.b16 %v803, %v802
  %v829 = vpack.c.b16 %v805, %v804
  %854 = vmatprep.subr.bf16.mxu0 0
  %855 = vmatpush1.bf16.msra.mxu0 %v813
  %856 = vmatprep.subr.bf16.mxu0 0
  %857 = vmatpush1.bf16.msra.mxu0 %v812
  %858 = vmatprep.subr.bf16.mxu0 0
  %859 = vmatpush1.bf16.msra.mxu0 %v811
  %860 = vmatprep.subr.bf16.mxu0 0
  %861 = vmatpush1.bf16.msra.mxu0 %v810
  %862 = vmatprep.subr.bf16.mxu0 0
  %863 = vmatpush1.bf16.msra.mxu0 %v809
  %864 = vmatprep.subr.bf16.mxu0 0
  %865 = vmatpush1.bf16.msra.mxu0 %v808
  %866 = vmatprep.subr.bf16.mxu0 0
  %867 = vmatpush1.bf16.msra.mxu0 %v807
  %868 = vmatprep.subr.bf16.mxu0 0
  %869 = vmatpush1.bf16.msra.mxu0 %v806
  %870 = vmatprep.subr.bf16.mxu0 0
  %871 = vmatpush2.bf16.msra.mxu0 %v821
  %872 = vmatprep.subr.bf16.mxu0 0
  %873 = vmatpush2.bf16.msra.mxu0 %v820
  %874 = vmatprep.subr.bf16.mxu0 0
  %875 = vmatpush2.bf16.msra.mxu0 %v819
  %876 = vmatprep.subr.bf16.mxu0 0
  %877 = vmatpush2.bf16.msra.mxu0 %v818
  %878 = vmatprep.subr.bf16.mxu0 0
  %879 = vmatpush2.bf16.msra.mxu0 %v817
  %880 = vmatprep.subr.bf16.mxu0 0
  %881 = vmatpush2.bf16.msra.mxu0 %v816
  %882 = vmatprep.subr.bf16.mxu0 0
  %883 = vmatpush2.bf16.msra.mxu0 %v815
  %884 = vmatprep.subr.bf16.mxu0 0
  %885 = vmatpush2.bf16.msra.mxu0 %v814
  %886 = vmatprep.mubr.bf16.mxu0 %v519
  %887 = vmatmul.mubr.bf16.gmra.mxu0 %v518
  %v888 = vpop.f32.mrf.mxu0
  %v889 = vadd.f32 %v196, %v888
  %v890 = vpop.f32.mrf.mxu0
  %v891 = vpop.f32.mrf.mxu0
  %v892 = vadd.f32 %v196, %v891
  %v893 = vpop.f32.mrf.mxu0
  %894 = vmatprep.mubr.bf16.mxu0 %v522
  %895 = vmatmul.mubr.bf16.gmra.mxu0 %v521
  %v896 = vpop.f32.mrf.mxu0
  %v897 = vadd.f32 %v196, %v896
  %v898 = vpop.f32.mrf.mxu0
  %v899 = vpop.f32.mrf.mxu0
  %v900 = vadd.f32 %v196, %v899
  %v901 = vpop.f32.mrf.mxu0
  %902 = vmatprep.mubr.bf16.mxu0 %v525
  %903 = vmatmul.mubr.bf16.gmra.mxu0 %v524
  %v904 = vpop.f32.mrf.mxu0
  %v905 = vadd.f32 %v196, %v904
  %v906 = vpop.f32.mrf.mxu0
  %v907 = vpop.f32.mrf.mxu0
  %v908 = vadd.f32 %v196, %v907
  %v909 = vpop.f32.mrf.mxu0
  %910 = vmatprep.mubr.bf16.mxu0 %v528
  %911 = vmatmul.mubr.bf16.gmra.mxu0 %v527
  %v912 = vpop.f32.mrf.mxu0
  %v913 = vadd.f32 %v196, %v912
  %v914 = vpop.f32.mrf.mxu0
  %v915 = vpop.f32.mrf.mxu0
  %v916 = vadd.f32 %v196, %v915
  %v917 = vpop.f32.mrf.mxu0
  %918 = vmatprep.mubr.bf16.mxu0 %v531
  %919 = vmatmul.mubr.bf16.gmra.mxu0 %v530
  %v920 = vpop.f32.mrf.mxu0
  %v921 = vadd.f32 %v196, %v920
  %v922 = vpop.f32.mrf.mxu0
  %v923 = vpop.f32.mrf.mxu0
  %v924 = vadd.f32 %v196, %v923
  %v925 = vpop.f32.mrf.mxu0
  %926 = vmatprep.mubr.bf16.mxu0 %v534
  %927 = vmatmul.mubr.bf16.gmra.mxu0 %v533
  %v928 = vpop.f32.mrf.mxu0
  %v929 = vadd.f32 %v196, %v928
  %v930 = vpop.f32.mrf.mxu0
  %v931 = vpop.f32.mrf.mxu0
  %v932 = vadd.f32 %v196, %v931
  %v933 = vpop.f32.mrf.mxu0
  %934 = vmatprep.mubr.bf16.mxu0 %v537
  %935 = vmatmul.mubr.bf16.gmra.mxu0 %v536
  %v936 = vpop.f32.mrf.mxu0
  %v937 = vadd.f32 %v196, %v936
  %v938 = vpop.f32.mrf.mxu0
  %v939 = vpop.f32.mrf.mxu0
  %v940 = vadd.f32 %v196, %v939
  %v941 = vpop.f32.mrf.mxu0
  %942 = vmatprep.mubr.bf16.mxu0 %v540
  %943 = vmatmul.mubr.bf16.gmra.mxu0 %v539
  %v944 = vpop.f32.mrf.mxu0
  %v945 = vadd.f32 %v196, %v944
  %v946 = vpop.f32.mrf.mxu0
  %v947 = vpop.f32.mrf.mxu0
  %v948 = vadd.f32 %v196, %v947
  %v949 = vpop.f32.mrf.mxu0
  %950 = vmatprep.mubr.bf16.mxu0 %v543
  %951 = vmatmul.mubr.bf16.gmra.mxu0 %v542
  %v952 = vpop.f32.mrf.mxu0
  %v953 = vadd.f32 %v196, %v952
  %v954 = vpop.f32.mrf.mxu0
  %v955 = vpop.f32.mrf.mxu0
  %v956 = vadd.f32 %v196, %v955
  %v957 = vpop.f32.mrf.mxu0
  %958 = vmatprep.mubr.bf16.mxu0 %v546
  %959 = vmatmul.mubr.bf16.gmra.mxu0 %v545
  %v960 = vpop.f32.mrf.mxu0
  %v961 = vadd.f32 %v196, %v960
  %v962 = vpop.f32.mrf.mxu0
  %v963 = vpop.f32.mrf.mxu0
  %v964 = vadd.f32 %v196, %v963
  %v965 = vpop.f32.mrf.mxu0
  %966 = vmatprep.mubr.bf16.mxu0 %v549
  %967 = vmatmul.mubr.bf16.gmra.mxu0 %v548
  %v968 = vpop.f32.mrf.mxu0
  %v969 = vadd.f32 %v196, %v968
  %v970 = vpop.f32.mrf.mxu0
  %v971 = vpop.f32.mrf.mxu0
  %v972 = vadd.f32 %v196, %v971
  %v973 = vpop.f32.mrf.mxu0
  %974 = vmatprep.mubr.bf16.mxu0 %v552
  %975 = vmatmul.mubr.bf16.gmra.mxu0 %v551
  %v976 = vpop.f32.mrf.mxu0
  %v977 = vadd.f32 %v196, %v976
  %v978 = vpop.f32.mrf.mxu0
  %v979 = vpop.f32.mrf.mxu0
  %v980 = vadd.f32 %v196, %v979
  %v981 = vpop.f32.mrf.mxu0
  %982 = vmatprep.mubr.bf16.mxu0 %v555
  %983 = vmatmul.mubr.bf16.gmra.mxu0 %v554
  %v984 = vpop.f32.mrf.mxu0
  %v985 = vadd.f32 %v196, %v984
  %v986 = vpop.f32.mrf.mxu0
  %v987 = vpop.f32.mrf.mxu0
  %v988 = vadd.f32 %v196, %v987
  %v989 = vpop.f32.mrf.mxu0
  %990 = vmatprep.mubr.bf16.mxu0 %v558
  %991 = vmatmul.mubr.bf16.gmra.mxu0 %v557
  %v992 = vpop.f32.mrf.mxu0
  %v993 = vadd.f32 %v196, %v992
  %v994 = vpop.f32.mrf.mxu0
  %v995 = vpop.f32.mrf.mxu0
  %v996 = vadd.f32 %v196, %v995
  %v997 = vpop.f32.mrf.mxu0
  %998 = vmatprep.mubr.bf16.mxu0 %v561
  %999 = vmatmul.mubr.bf16.gmra.mxu0 %v560
  %v1000 = vpop.f32.mrf.mxu0
  %v1001 = vadd.f32 %v196, %v1000
  %v1002 = vpop.f32.mrf.mxu0
  %v1003 = vpop.f32.mrf.mxu0
  %v1004 = vadd.f32 %v196, %v1003
  %v1005 = vpop.f32.mrf.mxu0
  %1006 = vmatprep.mubr.bf16.mxu0 %v564
  %1007 = vmatmul.mubr.bf16.gmra.mxu0 %v563
  %v1008 = vpop.f32.mrf.mxu0
  %v1009 = vadd.f32 %v196, %v1008
  %v1010 = vpop.f32.mrf.mxu0
  %v1011 = vpop.f32.mrf.mxu0
  %v1012 = vadd.f32 %v196, %v1011
  %v1013 = vpop.f32.mrf.mxu0
  %1014 = vmatprep.mubr.bf16.mxu0 %v567
  %1015 = vmatmul.mubr.bf16.gmra.mxu0 %v566
  %v1016 = vpop.f32.mrf.mxu0
  %v1017 = vadd.f32 %v196, %v1016
  %v1018 = vpop.f32.mrf.mxu0
  %v1019 = vpop.f32.mrf.mxu0
  %v1020 = vadd.f32 %v196, %v1019
  %v1021 = vpop.f32.mrf.mxu0
  %1022 = vmatprep.mubr.bf16.mxu0 %v570
  %1023 = vmatmul.mubr.bf16.gmra.mxu0 %v569
  %v1024 = vpop.f32.mrf.mxu0
  %v1025 = vadd.f32 %v196, %v1024
  %v1026 = vpop.f32.mrf.mxu0
  %v1027 = vpop.f32.mrf.mxu0
  %v1028 = vadd.f32 %v196, %v1027
  %v1029 = vpop.f32.mrf.mxu0
  %1030 = vmatprep.mubr.bf16.mxu0 %v573
  %1031 = vmatmul.mubr.bf16.gmra.mxu0 %v572
  %v1032 = vpop.f32.mrf.mxu0
  %v1033 = vadd.f32 %v196, %v1032
  %v1034 = vpop.f32.mrf.mxu0
  %v1035 = vpop.f32.mrf.mxu0
  %v1036 = vadd.f32 %v196, %v1035
  %v1037 = vpop.f32.mrf.mxu0
  %1038 = vmatprep.mubr.bf16.mxu0 %v576
  %1039 = vmatmul.mubr.bf16.gmra.mxu0 %v575
  %v1040 = vpop.f32.mrf.mxu0
  %v1041 = vadd.f32 %v196, %v1040
  %v1042 = vpop.f32.mrf.mxu0
  %v1043 = vpop.f32.mrf.mxu0
  %v1044 = vadd.f32 %v196, %v1043
  %v1045 = vpop.f32.mrf.mxu0
  %1046 = vmatprep.mubr.bf16.mxu0 %v579
  %1047 = vmatmul.mubr.bf16.gmra.mxu0 %v578
  %v1048 = vpop.f32.mrf.mxu0
  %v1049 = vadd.f32 %v196, %v1048
  %v1050 = vpop.f32.mrf.mxu0
  %v1051 = vpop.f32.mrf.mxu0
  %v1052 = vadd.f32 %v196, %v1051
  %v1053 = vpop.f32.mrf.mxu0
  %1054 = vmatprep.mubr.bf16.mxu0 %v582
  %1055 = vmatmul.mubr.bf16.gmra.mxu0 %v581
  %v1056 = vpop.f32.mrf.mxu0
  %v1057 = vadd.f32 %v196, %v1056
  %v1058 = vpop.f32.mrf.mxu0
  %v1059 = vpop.f32.mrf.mxu0
  %v1060 = vadd.f32 %v196, %v1059
  %v1061 = vpop.f32.mrf.mxu0
  %1062 = vmatprep.mubr.bf16.mxu0 %v585
  %1063 = vmatmul.mubr.bf16.gmra.mxu0 %v584
  %v1064 = vpop.f32.mrf.mxu0
  %v1065 = vadd.f32 %v196, %v1064
  %v1066 = vpop.f32.mrf.mxu0
  %v1067 = vpop.f32.mrf.mxu0
  %v1068 = vadd.f32 %v196, %v1067
  %v1069 = vpop.f32.mrf.mxu0
  %1070 = vmatprep.mubr.bf16.mxu0 %v588
  %1071 = vmatmul.mubr.bf16.gmra.mxu0 %v587
  %v1072 = vpop.f32.mrf.mxu0
  %v1073 = vadd.f32 %v196, %v1072
  %v1074 = vpop.f32.mrf.mxu0
  %v1075 = vpop.f32.mrf.mxu0
  %v1076 = vadd.f32 %v196, %v1075
  %v1077 = vpop.f32.mrf.mxu0
  %1078 = vmatprep.mubr.bf16.mxu0 %v591
  %1079 = vmatmul.mubr.bf16.gmra.mxu0 %v590
  %v1080 = vpop.f32.mrf.mxu0
  %v1081 = vadd.f32 %v196, %v1080
  %v1082 = vpop.f32.mrf.mxu0
  %v1083 = vpop.f32.mrf.mxu0
  %v1084 = vadd.f32 %v196, %v1083
  %v1085 = vpop.f32.mrf.mxu0
  %1086 = vmatprep.mubr.bf16.mxu0 %v594
  %1087 = vmatmul.mubr.bf16.gmra.mxu0 %v593
  %v1088 = vpop.f32.mrf.mxu0
  %v1089 = vadd.f32 %v196, %v1088
  %v1090 = vpop.f32.mrf.mxu0
  %v1091 = vpop.f32.mrf.mxu0
  %v1092 = vadd.f32 %v196, %v1091
  %v1093 = vpop.f32.mrf.mxu0
  %1094 = vmatprep.mubr.bf16.mxu0 %v597
  %1095 = vmatmul.mubr.bf16.gmra.mxu0 %v596
  %v1096 = vpop.f32.mrf.mxu0
  %v1097 = vadd.f32 %v196, %v1096
  %v1098 = vpop.f32.mrf.mxu0
  %v1099 = vpop.f32.mrf.mxu0
  %v1100 = vadd.f32 %v196, %v1099
  %v1101 = vpop.f32.mrf.mxu0
  %1102 = vmatprep.mubr.bf16.mxu0 %v600
  %1103 = vmatmul.mubr.bf16.gmra.mxu0 %v599
  %v1104 = vpop.f32.mrf.mxu0
  %v1105 = vadd.f32 %v196, %v1104
  %v1106 = vpop.f32.mrf.mxu0
  %v1107 = vpop.f32.mrf.mxu0
  %v1108 = vadd.f32 %v196, %v1107
  %v1109 = vpop.f32.mrf.mxu0
  %1110 = vmatprep.mubr.bf16.mxu0 %v603
  %1111 = vmatmul.mubr.bf16.gmra.mxu0 %v602
  %v1112 = vpop.f32.mrf.mxu0
  %v1113 = vadd.f32 %v196, %v1112
  %v1114 = vpop.f32.mrf.mxu0
  %v1115 = vpop.f32.mrf.mxu0
  %v1116 = vadd.f32 %v196, %v1115
  %v1117 = vpop.f32.mrf.mxu0
  %1118 = vmatprep.mubr.bf16.mxu0 %v606
  %1119 = vmatmul.mubr.bf16.gmra.mxu0 %v605
  %v1120 = vpop.f32.mrf.mxu0
  %v1121 = vadd.f32 %v196, %v1120
  %v1122 = vpop.f32.mrf.mxu0
  %v1123 = vpop.f32.mrf.mxu0
  %v1124 = vadd.f32 %v196, %v1123
  %v1125 = vpop.f32.mrf.mxu0
  %1126 = vmatprep.mubr.bf16.mxu0 %v609
  %1127 = vmatmul.mubr.bf16.gmra.mxu0 %v608
  %v1128 = vpop.f32.mrf.mxu0
  %v1129 = vadd.f32 %v196, %v1128
  %v1130 = vpop.f32.mrf.mxu0
  %v1131 = vpop.f32.mrf.mxu0
  %v1132 = vadd.f32 %v196, %v1131
  %v1133 = vpop.f32.mrf.mxu0
  %1134 = vmatprep.mubr.bf16.mxu0 %v612
  %1135 = vmatmul.mubr.bf16.gmra.mxu0 %v611
  %v1136 = vpop.f32.mrf.mxu0
  %v1137 = vadd.f32 %v196, %v1136
  %v1138 = vpop.f32.mrf.mxu0
  %v1139 = vpop.f32.mrf.mxu0
  %v1140 = vadd.f32 %v196, %v1139
  %v1141 = vpop.f32.mrf.mxu0
  %1142 = vdwg.mxu0
  %1143 = vmatprep.subr.bf16.mxu0 0
  %1144 = vmatpush1.bf16.msra.mxu0 %v829
  %1145 = vmatprep.subr.bf16.mxu0 0
  %1146 = vmatpush1.bf16.msra.mxu0 %v828
  %1147 = vmatprep.subr.bf16.mxu0 0
  %1148 = vmatpush1.bf16.msra.mxu0 %v827
  %1149 = vmatprep.subr.bf16.mxu0 0
  %1150 = vmatpush1.bf16.msra.mxu0 %v826
  %1151 = vmatprep.subr.bf16.mxu0 0
  %1152 = vmatpush1.bf16.msra.mxu0 %v825
  %1153 = vmatprep.subr.bf16.mxu0 0
  %1154 = vmatpush1.bf16.msra.mxu0 %v824
  %1155 = vmatprep.subr.bf16.mxu0 0
  %1156 = vmatpush1.bf16.msra.mxu0 %v823
  %1157 = vmatprep.subr.bf16.mxu0 0
  %1158 = vmatpush1.bf16.msra.mxu0 %v822
  %1159 = vmatprep.subr.bf16.mxu0 0
  %1160 = vmatpush2.bf16.msra.mxu0 0
  %1161 = vmatprep.subr.bf16.mxu0 0
  %1162 = vmatpush2.bf16.msra.mxu0 0
  %1163 = vmatprep.subr.bf16.mxu0 0
  %1164 = vmatpush2.bf16.msra.mxu0 0
  %1165 = vmatprep.subr.bf16.mxu0 0
  %1166 = vmatpush2.bf16.msra.mxu0 0
  %1167 = vmatprep.subr.bf16.mxu0 0
  %1168 = vmatpush2.bf16.msra.mxu0 0
  %1169 = vmatprep.subr.bf16.mxu0 0
  %1170 = vmatpush2.bf16.msra.mxu0 0
  %1171 = vmatprep.subr.bf16.mxu0 0
  %1172 = vmatpush2.bf16.msra.mxu0 0
  %1173 = vmatprep.subr.bf16.mxu0 0
  %1174 = vmatpush2.bf16.msra.mxu0 0
  %1175 = vmatprep.mubr.bf16.mxu0 0
  %1176 = vmatmul.mubr.bf16.gmra.mxu0 %v520
  %v1177 = vpop.f32.mrf.mxu0
  %v1178 = vadd.f32 %v889, %v1177
  %v1179 = vpop.f32.mrf.mxu0
  %v1180 = vpop.f32.mrf.mxu0
  %v1181 = vadd.f32 %v892, %v1180
  %v1182 = vpop.f32.mrf.mxu0
  %1183 = vmatprep.mubr.bf16.mxu0 0
  %1184 = vmatmul.mubr.bf16.gmra.mxu0 %v523
  %v1185 = vpop.f32.mrf.mxu0
  %v1186 = vadd.f32 %v897, %v1185
  %v1187 = vpop.f32.mrf.mxu0
  %v1188 = vpop.f32.mrf.mxu0
  %v1189 = vadd.f32 %v900, %v1188
  %v1190 = vpop.f32.mrf.mxu0
  %1191 = vmatprep.mubr.bf16.mxu0 0
  %1192 = vmatmul.mubr.bf16.gmra.mxu0 %v526
  %v1193 = vpop.f32.mrf.mxu0
  %v1194 = vadd.f32 %v905, %v1193
  %v1195 = vpop.f32.mrf.mxu0
  %v1196 = vpop.f32.mrf.mxu0
  %v1197 = vadd.f32 %v908, %v1196
  %v1198 = vpop.f32.mrf.mxu0
  %1199 = vmatprep.mubr.bf16.mxu0 0
  %1200 = vmatmul.mubr.bf16.gmra.mxu0 %v529
  %v1201 = vpop.f32.mrf.mxu0
  %v1202 = vadd.f32 %v913, %v1201
  %v1203 = vpop.f32.mrf.mxu0
  %v1204 = vpop.f32.mrf.mxu0
  %v1205 = vadd.f32 %v916, %v1204
  %v1206 = vpop.f32.mrf.mxu0
  %1207 = vmatprep.mubr.bf16.mxu0 0
  %1208 = vmatmul.mubr.bf16.gmra.mxu0 %v532
  %v1209 = vpop.f32.mrf.mxu0
  %v1210 = vadd.f32 %v921, %v1209
  %v1211 = vpop.f32.mrf.mxu0
  %v1212 = vpop.f32.mrf.mxu0
  %v1213 = vadd.f32 %v924, %v1212
  %v1214 = vpop.f32.mrf.mxu0
  %1215 = vmatprep.mubr.bf16.mxu0 0
  %1216 = vmatmul.mubr.bf16.gmra.mxu0 %v535
  %v1217 = vpop.f32.mrf.mxu0
  %v1218 = vadd.f32 %v929, %v1217
  %v1219 = vpop.f32.mrf.mxu0
  %v1220 = vpop.f32.mrf.mxu0
  %v1221 = vadd.f32 %v932, %v1220
  %v1222 = vpop.f32.mrf.mxu0
  %1223 = vmatprep.mubr.bf16.mxu0 0
  %1224 = vmatmul.mubr.bf16.gmra.mxu0 %v538
  %v1225 = vpop.f32.mrf.mxu0
  %v1226 = vadd.f32 %v937, %v1225
  %v1227 = vpop.f32.mrf.mxu0
  %v1228 = vpop.f32.mrf.mxu0
  %v1229 = vadd.f32 %v940, %v1228
  %v1230 = vpop.f32.mrf.mxu0
  %1231 = vmatprep.mubr.bf16.mxu0 0
  %1232 = vmatmul.mubr.bf16.gmra.mxu0 %v541
  %v1233 = vpop.f32.mrf.mxu0
  %v1234 = vadd.f32 %v945, %v1233
  %v1235 = vpop.f32.mrf.mxu0
  %v1236 = vpop.f32.mrf.mxu0
  %v1237 = vadd.f32 %v948, %v1236
  %v1238 = vpop.f32.mrf.mxu0
  %1239 = vmatprep.mubr.bf16.mxu0 0
  %1240 = vmatmul.mubr.bf16.gmra.mxu0 %v544
  %v1241 = vpop.f32.mrf.mxu0
  %v1242 = vadd.f32 %v953, %v1241
  %v1243 = vpop.f32.mrf.mxu0
  %v1244 = vpop.f32.mrf.mxu0
  %v1245 = vadd.f32 %v956, %v1244
  %v1246 = vpop.f32.mrf.mxu0
  %1247 = vmatprep.mubr.bf16.mxu0 0
  %1248 = vmatmul.mubr.bf16.gmra.mxu0 %v547
  %v1249 = vpop.f32.mrf.mxu0
  %v1250 = vadd.f32 %v961, %v1249
  %v1251 = vpop.f32.mrf.mxu0
  %v1252 = vpop.f32.mrf.mxu0
  %v1253 = vadd.f32 %v964, %v1252
  %v1254 = vpop.f32.mrf.mxu0
  %1255 = vmatprep.mubr.bf16.mxu0 0
  %1256 = vmatmul.mubr.bf16.gmra.mxu0 %v550
  %v1257 = vpop.f32.mrf.mxu0
  %v1258 = vadd.f32 %v969, %v1257
  %v1259 = vpop.f32.mrf.mxu0
  %v1260 = vpop.f32.mrf.mxu0
  %v1261 = vadd.f32 %v972, %v1260
  %v1262 = vpop.f32.mrf.mxu0
  %1263 = vmatprep.mubr.bf16.mxu0 0
  %1264 = vmatmul.mubr.bf16.gmra.mxu0 %v553
  %v1265 = vpop.f32.mrf.mxu0
  %v1266 = vadd.f32 %v977, %v1265
  %v1267 = vpop.f32.mrf.mxu0
  %v1268 = vpop.f32.mrf.mxu0
  %v1269 = vadd.f32 %v980, %v1268
  %v1270 = vpop.f32.mrf.mxu0
  %1271 = vmatprep.mubr.bf16.mxu0 0
  %1272 = vmatmul.mubr.bf16.gmra.mxu0 %v556
  %v1273 = vpop.f32.mrf.mxu0
  %v1274 = vadd.f32 %v985, %v1273
  %v1275 = vpop.f32.mrf.mxu0
  %v1276 = vpop.f32.mrf.mxu0
  %v1277 = vadd.f32 %v988, %v1276
  %v1278 = vpop.f32.mrf.mxu0
  %1279 = vmatprep.mubr.bf16.mxu0 0
  %1280 = vmatmul.mubr.bf16.gmra.mxu0 %v559
  %v1281 = vpop.f32.mrf.mxu0
  %v1282 = vadd.f32 %v993, %v1281
  %v1283 = vpop.f32.mrf.mxu0
  %v1284 = vpop.f32.mrf.mxu0
  %v1285 = vadd.f32 %v996, %v1284
  %v1286 = vpop.f32.mrf.mxu0
  %1287 = vmatprep.mubr.bf16.mxu0 0
  %1288 = vmatmul.mubr.bf16.gmra.mxu0 %v562
  %v1289 = vpop.f32.mrf.mxu0
  %v1290 = vadd.f32 %v1001, %v1289
  %v1291 = vpop.f32.mrf.mxu0
  %v1292 = vpop.f32.mrf.mxu0
  %v1293 = vadd.f32 %v1004, %v1292
  %v1294 = vpop.f32.mrf.mxu0
  %1295 = vmatprep.mubr.bf16.mxu0 0
  %1296 = vmatmul.mubr.bf16.gmra.mxu0 %v565
  %v1297 = vpop.f32.mrf.mxu0
  %v1298 = vadd.f32 %v1009, %v1297
  %v1299 = vpop.f32.mrf.mxu0
  %v1300 = vpop.f32.mrf.mxu0
  %v1301 = vadd.f32 %v1012, %v1300
  %v1302 = vpop.f32.mrf.mxu0
  %1303 = vmatprep.mubr.bf16.mxu0 0
  %1304 = vmatmul.mubr.bf16.gmra.mxu0 %v568
  %v1305 = vpop.f32.mrf.mxu0
  %v1306 = vadd.f32 %v1017, %v1305
  %v1307 = vpop.f32.mrf.mxu0
  %v1308 = vpop.f32.mrf.mxu0
  %v1309 = vadd.f32 %v1020, %v1308
  %v1310 = vpop.f32.mrf.mxu0
  %1311 = vmatprep.mubr.bf16.mxu0 0
  %1312 = vmatmul.mubr.bf16.gmra.mxu0 %v571
  %v1313 = vpop.f32.mrf.mxu0
  %v1314 = vadd.f32 %v1025, %v1313
  %v1315 = vpop.f32.mrf.mxu0
  %v1316 = vpop.f32.mrf.mxu0
  %v1317 = vadd.f32 %v1028, %v1316
  %v1318 = vpop.f32.mrf.mxu0
  %1319 = vmatprep.mubr.bf16.mxu0 0
  %1320 = vmatmul.mubr.bf16.gmra.mxu0 %v574
  %v1321 = vpop.f32.mrf.mxu0
  %v1322 = vadd.f32 %v1033, %v1321
  %v1323 = vpop.f32.mrf.mxu0
  %v1324 = vpop.f32.mrf.mxu0
  %v1325 = vadd.f32 %v1036, %v1324
  %v1326 = vpop.f32.mrf.mxu0
  %1327 = vmatprep.mubr.bf16.mxu0 0
  %1328 = vmatmul.mubr.bf16.gmra.mxu0 %v577
  %v1329 = vpop.f32.mrf.mxu0
  %v1330 = vadd.f32 %v1041, %v1329
  %v1331 = vpop.f32.mrf.mxu0
  %v1332 = vpop.f32.mrf.mxu0
  %v1333 = vadd.f32 %v1044, %v1332
  %v1334 = vpop.f32.mrf.mxu0
  %1335 = vmatprep.mubr.bf16.mxu0 0
  %1336 = vmatmul.mubr.bf16.gmra.mxu0 %v580
  %v1337 = vpop.f32.mrf.mxu0
  %v1338 = vadd.f32 %v1049, %v1337
  %v1339 = vpop.f32.mrf.mxu0
  %v1340 = vpop.f32.mrf.mxu0
  %v1341 = vadd.f32 %v1052, %v1340
  %v1342 = vpop.f32.mrf.mxu0
  %1343 = vmatprep.mubr.bf16.mxu0 0
  %1344 = vmatmul.mubr.bf16.gmra.mxu0 %v583
  %v1345 = vpop.f32.mrf.mxu0
  %v1346 = vadd.f32 %v1057, %v1345
  %v1347 = vpop.f32.mrf.mxu0
  %v1348 = vpop.f32.mrf.mxu0
  %v1349 = vadd.f32 %v1060, %v1348
  %v1350 = vpop.f32.mrf.mxu0
  %1351 = vmatprep.mubr.bf16.mxu0 0
  %1352 = vmatmul.mubr.bf16.gmra.mxu0 %v586
  %v1353 = vpop.f32.mrf.mxu0
  %v1354 = vadd.f32 %v1065, %v1353
  %v1355 = vpop.f32.mrf.mxu0
  %v1356 = vpop.f32.mrf.mxu0
  %v1357 = vadd.f32 %v1068, %v1356
  %v1358 = vpop.f32.mrf.mxu0
  %1359 = vmatprep.mubr.bf16.mxu0 0
  %1360 = vmatmul.mubr.bf16.gmra.mxu0 %v589
  %v1361 = vpop.f32.mrf.mxu0
  %v1362 = vadd.f32 %v1073, %v1361
  %v1363 = vpop.f32.mrf.mxu0
  %v1364 = vpop.f32.mrf.mxu0
  %v1365 = vadd.f32 %v1076, %v1364
  %v1366 = vpop.f32.mrf.mxu0
  %1367 = vmatprep.mubr.bf16.mxu0 0
  %1368 = vmatmul.mubr.bf16.gmra.mxu0 %v592
  %v1369 = vpop.f32.mrf.mxu0
  %v1370 = vadd.f32 %v1081, %v1369
  %v1371 = vpop.f32.mrf.mxu0
  %v1372 = vpop.f32.mrf.mxu0
  %v1373 = vadd.f32 %v1084, %v1372
  %v1374 = vpop.f32.mrf.mxu0
  %1375 = vmatprep.mubr.bf16.mxu0 0
  %1376 = vmatmul.mubr.bf16.gmra.mxu0 %v595
  %v1377 = vpop.f32.mrf.mxu0
  %v1378 = vadd.f32 %v1089, %v1377
  %v1379 = vpop.f32.mrf.mxu0
  %v1380 = vpop.f32.mrf.mxu0
  %v1381 = vadd.f32 %v1092, %v1380
  %v1382 = vpop.f32.mrf.mxu0
  %1383 = vmatprep.mubr.bf16.mxu0 0
  %1384 = vmatmul.mubr.bf16.gmra.mxu0 %v598
  %v1385 = vpop.f32.mrf.mxu0
  %v1386 = vadd.f32 %v1097, %v1385
  %v1387 = vpop.f32.mrf.mxu0
  %v1388 = vpop.f32.mrf.mxu0
  %v1389 = vadd.f32 %v1100, %v1388
  %v1390 = vpop.f32.mrf.mxu0
  %1391 = vmatprep.mubr.bf16.mxu0 0
  %1392 = vmatmul.mubr.bf16.gmra.mxu0 %v601
  %v1393 = vpop.f32.mrf.mxu0
  %v1394 = vadd.f32 %v1105, %v1393
  %v1395 = vpop.f32.mrf.mxu0
  %v1396 = vpop.f32.mrf.mxu0
  %v1397 = vadd.f32 %v1108, %v1396
  %v1398 = vpop.f32.mrf.mxu0
  %1399 = vmatprep.mubr.bf16.mxu0 0
  %1400 = vmatmul.mubr.bf16.gmra.mxu0 %v604
  %v1401 = vpop.f32.mrf.mxu0
  %v1402 = vadd.f32 %v1113, %v1401
  %v1403 = vpop.f32.mrf.mxu0
  %v1404 = vpop.f32.mrf.mxu0
  %v1405 = vadd.f32 %v1116, %v1404
  %v1406 = vpop.f32.mrf.mxu0
  %1407 = vmatprep.mubr.bf16.mxu0 0
  %1408 = vmatmul.mubr.bf16.gmra.mxu0 %v607
  %v1409 = vpop.f32.mrf.mxu0
  %v1410 = vadd.f32 %v1121, %v1409
  %v1411 = vpop.f32.mrf.mxu0
  %v1412 = vpop.f32.mrf.mxu0
  %v1413 = vadd.f32 %v1124, %v1412
  %v1414 = vpop.f32.mrf.mxu0
  %1415 = vmatprep.mubr.bf16.mxu0 0
  %1416 = vmatmul.mubr.bf16.gmra.mxu0 %v610
  %v1417 = vpop.f32.mrf.mxu0
  %v1418 = vadd.f32 %v1129, %v1417
  %v1419 = vpop.f32.mrf.mxu0
  %v1420 = vpop.f32.mrf.mxu0
  %v1421 = vadd.f32 %v1132, %v1420
  %v1422 = vpop.f32.mrf.mxu0
  %1423 = vmatprep.mubr.bf16.mxu0 0
  %1424 = vmatmul.mubr.bf16.gmra.mxu0 %v613
  %v1425 = vpop.f32.mrf.mxu0
  %v1426 = vadd.f32 %v1137, %v1425
  %v1427 = vpop.f32.mrf.mxu0
  %v1428 = vpop.f32.mrf.mxu0
  %v1429 = vadd.f32 %v1140, %v1428
  %v1430 = vpop.f32.mrf.mxu0
  %1431 = vdwg.mxu0
  %v1432 = vmax.f32 %v1178, 0.0
  %v1433 = vmax.f32 %v1181, 0.0
  %v1434 = vmax.f32 %v1186, 0.0
  %v1435 = vmax.f32 %v1189, 0.0
  %v1436 = vmax.f32 %v1194, 0.0
  %v1437 = vmax.f32 %v1197, 0.0
  %v1438 = vmax.f32 %v1202, 0.0
  %v1439 = vmax.f32 %v1205, 0.0
  %v1440 = vmax.f32 %v1210, 0.0
  %v1441 = vmax.f32 %v1213, 0.0
  %v1442 = vmax.f32 %v1218, 0.0
  %v1443 = vmax.f32 %v1221, 0.0
  %v1444 = vmax.f32 %v1226, 0.0
  %v1445 = vmax.f32 %v1229, 0.0
  %v1446 = vmax.f32 %v1234, 0.0
  %v1447 = vmax.f32 %v1237, 0.0
  %v1448 = vmax.f32 %v1242, 0.0
  %v1449 = vmax.f32 %v1245, 0.0
  %v1450 = vmax.f32 %v1250, 0.0
  %v1451 = vmax.f32 %v1253, 0.0
  %v1452 = vmax.f32 %v1258, 0.0
  %v1453 = vmax.f32 %v1261, 0.0
  %v1454 = vmax.f32 %v1266, 0.0
  %v1455 = vmax.f32 %v1269, 0.0
  %v1456 = vmax.f32 %v1274, 0.0
  %v1457 = vmax.f32 %v1277, 0.0
  %v1458 = vmax.f32 %v1282, 0.0
  %v1459 = vmax.f32 %v1285, 0.0
  %v1460 = vmax.f32 %v1290, 0.0
  %v1461 = vmax.f32 %v1293, 0.0
  %v1462 = vmax.f32 %v1298, 0.0
  %v1463 = vmax.f32 %v1301, 0.0
  %v1464 = vmax.f32 %v1306, 0.0
  %v1465 = vmax.f32 %v1309, 0.0
  %v1466 = vmax.f32 %v1314, 0.0
  %v1467 = vmax.f32 %v1317, 0.0
  %v1468 = vmax.f32 %v1322, 0.0
  %v1469 = vmax.f32 %v1325, 0.0
  %v1470 = vmax.f32 %v1330, 0.0
  %v1471 = vmax.f32 %v1333, 0.0
  %v1472 = vmax.f32 %v1338, 0.0
  %v1473 = vmax.f32 %v1341, 0.0
  %v1474 = vmax.f32 %v1346, 0.0
  %v1475 = vmax.f32 %v1349, 0.0
  %v1476 = vmax.f32 %v1354, 0.0
  %v1477 = vmax.f32 %v1357, 0.0
  %v1478 = vmax.f32 %v1362, 0.0
  %v1479 = vmax.f32 %v1365, 0.0
  %v1480 = vmax.f32 %v1370, 0.0
  %v1481 = vmax.f32 %v1373, 0.0
  %v1482 = vmax.f32 %v1378, 0.0
  %v1483 = vmax.f32 %v1381, 0.0
  %v1484 = vmax.f32 %v1386, 0.0
  %v1485 = vmax.f32 %v1389, 0.0
  %v1486 = vmax.f32 %v1394, 0.0
  %v1487 = vmax.f32 %v1397, 0.0
  %v1488 = vmax.f32 %v1402, 0.0
  %v1489 = vmax.f32 %v1405, 0.0
  %v1490 = vmax.f32 %v1410, 0.0
  %v1491 = vmax.f32 %v1413, 0.0
  %v1492 = vmax.f32 %v1418, 0.0
  %v1493 = vmax.f32 %v1421, 0.0
  %v1494 = vmax.f32 %v1426, 0.0
  %v1495 = vmax.f32 %v1429, 0.0
  %v1496 = vpack.c.bf16 %v1433, %v1432
  %v1497 = vpack.c.bf16 %v1435, %v1434
  %v1498 = vpack.c.bf16 %v1437, %v1436
  %v1499 = vpack.c.bf16 %v1439, %v1438
  %v1500 = vpack.c.bf16 %v1441, %v1440
  %v1501 = vpack.c.bf16 %v1443, %v1442
  %v1502 = vpack.c.bf16 %v1445, %v1444
  %v1503 = vpack.c.bf16 %v1447, %v1446
  %v1504 = vpack.c.bf16 %v1449, %v1448
  %v1505 = vpack.c.bf16 %v1451, %v1450
  %v1506 = vpack.c.bf16 %v1453, %v1452
  %v1507 = vpack.c.bf16 %v1455, %v1454
  %v1508 = vpack.c.bf16 %v1457, %v1456
  %v1509 = vpack.c.bf16 %v1459, %v1458
  %v1510 = vpack.c.bf16 %v1461, %v1460
  %v1511 = vpack.c.bf16 %v1463, %v1462
  %v1512 = vpack.c.bf16 %v1465, %v1464
  %v1513 = vpack.c.bf16 %v1467, %v1466
  %v1514 = vpack.c.bf16 %v1469, %v1468
  %v1515 = vpack.c.bf16 %v1471, %v1470
  %v1516 = vpack.c.bf16 %v1473, %v1472
  %v1517 = vpack.c.bf16 %v1475, %v1474
  %v1518 = vpack.c.bf16 %v1477, %v1476
  %v1519 = vpack.c.bf16 %v1479, %v1478
  %v1520 = vpack.c.bf16 %v1481, %v1480
  %v1521 = vpack.c.bf16 %v1483, %v1482
  %v1522 = vpack.c.bf16 %v1485, %v1484
  %v1523 = vpack.c.bf16 %v1487, %v1486
  %v1524 = vpack.c.bf16 %v1489, %v1488
  %v1525 = vpack.c.bf16 %v1491, %v1490
  %v1526 = vpack.c.bf16 %v1493, %v1492
  %v1527 = vpack.c.bf16 %v1495, %v1494
  %v1560 = vunpack.c.l.b16 %v1496
  %v1561 = vunpack.c.h.b16 %v1496
  %v1562 = vunpack.c.l.b16 %v1497
  %v1563 = vunpack.c.h.b16 %v1497
  %v1564 = vunpack.c.l.b16 %v1498
  %v1565 = vunpack.c.h.b16 %v1498
  %v1566 = vunpack.c.l.b16 %v1499
  %v1567 = vunpack.c.h.b16 %v1499
  %v1568 = vunpack.c.l.b16 %v1500
  %v1569 = vunpack.c.h.b16 %v1500
  %v1570 = vunpack.c.l.b16 %v1501
  %v1571 = vunpack.c.h.b16 %v1501
  %v1572 = vunpack.c.l.b16 %v1502
  %v1573 = vunpack.c.h.b16 %v1502
  %v1574 = vunpack.c.l.b16 %v1503
  %v1575 = vunpack.c.h.b16 %v1503
  %v1576 = vunpack.c.l.b16 %v1504
  %v1577 = vunpack.c.h.b16 %v1504
  %v1578 = vunpack.c.l.b16 %v1505
  %v1579 = vunpack.c.h.b16 %v1505
  %v1580 = vunpack.c.l.b16 %v1506
  %v1581 = vunpack.c.h.b16 %v1506
  %v1582 = vunpack.c.l.b16 %v1507
  %v1583 = vunpack.c.h.b16 %v1507
  %v1584 = vunpack.c.l.b16 %v1508
  %v1585 = vunpack.c.h.b16 %v1508
  %v1586 = vunpack.c.l.b16 %v1509
  %v1587 = vunpack.c.h.b16 %v1509
  %v1588 = vunpack.c.l.b16 %v1510
  %v1589 = vunpack.c.h.b16 %v1510
  %v1590 = vunpack.c.l.b16 %v1511
  %v1591 = vunpack.c.h.b16 %v1511
  %v1592 = vunpack.c.l.b16 %v1512
  %v1593 = vunpack.c.h.b16 %v1512
  %v1594 = vunpack.c.l.b16 %v1513
  %v1595 = vunpack.c.h.b16 %v1513
  %v1596 = vunpack.c.l.b16 %v1514
  %v1597 = vunpack.c.h.b16 %v1514
  %v1598 = vunpack.c.l.b16 %v1515
  %v1599 = vunpack.c.h.b16 %v1515
  %v1600 = vunpack.c.l.b16 %v1516
  %v1601 = vunpack.c.h.b16 %v1516
  %v1602 = vunpack.c.l.b16 %v1517
  %v1603 = vunpack.c.h.b16 %v1517
  %v1604 = vunpack.c.l.b16 %v1518
  %v1605 = vunpack.c.h.b16 %v1518
  %v1606 = vunpack.c.l.b16 %v1519
  %v1607 = vunpack.c.h.b16 %v1519
  %v1608 = vunpack.c.l.b16 %v1520
  %v1609 = vunpack.c.h.b16 %v1520
  %v1610 = vunpack.c.l.b16 %v1521
  %v1611 = vunpack.c.h.b16 %v1521
  %v1612 = vunpack.c.l.b16 %v1522
  %v1613 = vunpack.c.h.b16 %v1522
  %v1614 = vunpack.c.l.b16 %v1523
  %v1615 = vunpack.c.h.b16 %v1523
  %v1616 = vunpack.c.l.b16 %v1524
  %v1617 = vunpack.c.h.b16 %v1524
  %v1618 = vunpack.c.l.b16 %v1525
  %v1619 = vunpack.c.h.b16 %v1525
  %v1620 = vunpack.c.l.b16 %v1526
  %v1621 = vunpack.c.h.b16 %v1526
  %v1622 = vunpack.c.l.b16 %v1527
  %v1623 = vunpack.c.h.b16 %v1527
  %v1624 = vpack.c.b16 %v1560, %v1560
  %v1625 = vpack.c.b16 %v1561, %v1561
  %v1626 = vpack.c.b16 %v1562, %v1562
  %v1627 = vpack.c.b16 %v1563, %v1563
  %v1628 = vpack.c.b16 %v1564, %v1564
  %v1629 = vpack.c.b16 %v1565, %v1565
  %v1630 = vpack.c.b16 %v1566, %v1566
  %v1631 = vpack.c.b16 %v1567, %v1567
  %v1632 = vpack.c.b16 %v1568, %v1568
  %v1633 = vpack.c.b16 %v1569, %v1569
  %v1634 = vpack.c.b16 %v1570, %v1570
  %v1635 = vpack.c.b16 %v1571, %v1571
  %v1636 = vpack.c.b16 %v1572, %v1572
  %v1637 = vpack.c.b16 %v1573, %v1573
  %v1638 = vpack.c.b16 %v1574, %v1574
  %v1639 = vpack.c.b16 %v1575, %v1575
  %v1640 = vpack.c.b16 %v1576, %v1576
  %v1641 = vpack.c.b16 %v1577, %v1577
  %v1642 = vpack.c.b16 %v1578, %v1578
  %v1643 = vpack.c.b16 %v1579, %v1579
  %v1644 = vpack.c.b16 %v1580, %v1580
  %v1645 = vpack.c.b16 %v1581, %v1581
  %v1646 = vpack.c.b16 %v1582, %v1582
  %v1647 = vpack.c.b16 %v1583, %v1583
  %v1648 = vpack.c.b16 %v1584, %v1584
  %v1649 = vpack.c.b16 %v1585, %v1585
  %v1650 = vpack.c.b16 %v1586, %v1586
  %v1651 = vpack.c.b16 %v1587, %v1587
  %v1652 = vpack.c.b16 %v1588, %v1588
  %v1653 = vpack.c.b16 %v1589, %v1589
  %v1654 = vpack.c.b16 %v1590, %v1590
  %v1655 = vpack.c.b16 %v1591, %v1591
  %v1656 = vpack.c.b16 %v1592, %v1592
  %v1657 = vpack.c.b16 %v1593, %v1593
  %v1658 = vpack.c.b16 %v1594, %v1594
  %v1659 = vpack.c.b16 %v1595, %v1595
  %v1660 = vpack.c.b16 %v1596, %v1596
  %v1661 = vpack.c.b16 %v1597, %v1597
  %v1662 = vpack.c.b16 %v1598, %v1598
  %v1663 = vpack.c.b16 %v1599, %v1599
  %v1664 = vpack.c.b16 %v1600, %v1600
  %v1665 = vpack.c.b16 %v1601, %v1601
  %v1666 = vpack.c.b16 %v1602, %v1602
  %v1667 = vpack.c.b16 %v1603, %v1603
  %v1668 = vpack.c.b16 %v1604, %v1604
  %v1669 = vpack.c.b16 %v1605, %v1605
  %v1670 = vpack.c.b16 %v1606, %v1606
  %v1671 = vpack.c.b16 %v1607, %v1607
  %v1672 = vpack.c.b16 %v1608, %v1608
  %v1673 = vpack.c.b16 %v1609, %v1609
  %v1674 = vpack.c.b16 %v1610, %v1610
  %v1675 = vpack.c.b16 %v1611, %v1611
  %v1676 = vpack.c.b16 %v1612, %v1612
  %v1677 = vpack.c.b16 %v1613, %v1613
  %v1678 = vpack.c.b16 %v1614, %v1614
  %v1679 = vpack.c.b16 %v1615, %v1615
  %v1680 = vpack.c.b16 %v1616, %v1616
  %v1681 = vpack.c.b16 %v1617, %v1617
  %v1682 = vpack.c.b16 %v1618, %v1618
  %v1683 = vpack.c.b16 %v1619, %v1619
  %v1684 = vpack.c.b16 %v1620, %v1620
  %v1685 = vpack.c.b16 %v1621, %v1621
  %v1686 = vpack.c.b16 %v1622, %v1622
  %v1687 = vpack.c.b16 %v1623, %v1623
  %1752 = vst [vmem:[%s3] sm:$0xf] %v1624
  %1753 = vst [vmem:[%s3 + $0x4] sm:$0xf] %v1625
  %1754 = vst [vmem:[%s3 + $0x8] sm:$0xf] %v1626
  %1755 = vst [vmem:[%s3 + $0xc] sm:$0xf] %v1627
  %1756 = vst [vmem:[%s3 + $0x10] sm:$0xf] %v1628
  %1757 = vst [vmem:[%s3 + $0x14] sm:$0xf] %v1629
  %1758 = vst [vmem:[%s3 + $0x18] sm:$0xf] %v1630
  %1759 = vst [vmem:[%s3 + $0x1c] sm:$0xf] %v1631
  %1760 = vst [vmem:[%s3 + $0x20] sm:$0xf] %v1632
  %1761 = vst [vmem:[%s3 + $0x24] sm:$0xf] %v1633
  %1762 = vst [vmem:[%s3 + $0x28] sm:$0xf] %v1634
  %1763 = vst [vmem:[%s3 + $0x2c] sm:$0xf] %v1635
  %1764 = vst [vmem:[%s3 + $0x30] sm:$0xf] %v1636
  %1765 = vst [vmem:[%s3 + $0x34] sm:$0xf] %v1637
  %1766 = vst [vmem:[%s3 + $0x38] sm:$0xf] %v1638
  %1767 = vst [vmem:[%s3 + $0x3c] sm:$0xf] %v1639
  %1768 = vst [vmem:[%s3 + $0x40] sm:$0xf] %v1640
  %1769 = vst [vmem:[%s3 + $0x44] sm:$0xf] %v1641
  %1770 = vst [vmem:[%s3 + $0x48] sm:$0xf] %v1642
  %1771 = vst [vmem:[%s3 + $0x4c] sm:$0xf] %v1643
  %1772 = vst [vmem:[%s3 + $0x50] sm:$0xf] %v1644
  %1773 = vst [vmem:[%s3 + $0x54] sm:$0xf] %v1645
  %1774 = vst [vmem:[%s3 + $0x58] sm:$0xf] %v1646
  %1775 = vst [vmem:[%s3 + $0x5c] sm:$0xf] %v1647
  %1776 = vst [vmem:[%s3 + $0x60] sm:$0xf] %v1648
  %1777 = vst [vmem:[%s3 + $0x64] sm:$0xf] %v1649
  %1778 = vst [vmem:[%s3 + $0x68] sm:$0xf] %v1650
  %1779 = vst [vmem:[%s3 + $0x6c] sm:$0xf] %v1651
  %1780 = vst [vmem:[%s3 + $0x70] sm:$0xf] %v1652
  %1781 = vst [vmem:[%s3 + $0x74] sm:$0xf] %v1653
  %1782 = vst [vmem:[%s3 + $0x78] sm:$0xf] %v1654
  %1783 = vst [vmem:[%s3 + $0x7c] sm:$0xf] %v1655
  %1784 = vst [vmem:[%s3 + $0x80] sm:$0xf] %v1656
  %1785 = vst [vmem:[%s3 + $0x84] sm:$0xf] %v1657
  %1786 = vst [vmem:[%s3 + $0x88] sm:$0xf] %v1658
  %1787 = vst [vmem:[%s3 + $0x8c] sm:$0xf] %v1659
  %1788 = vst [vmem:[%s3 + $0x90] sm:$0xf] %v1660
  %1789 = vst [vmem:[%s3 + $0x94] sm:$0xf] %v1661
  %1790 = vst [vmem:[%s3 + $0x98] sm:$0xf] %v1662
  %1791 = vst [vmem:[%s3 + $0x9c] sm:$0xf] %v1663
  %1792 = vst [vmem:[%s3 + $0xa0] sm:$0xf] %v1664
  %1793 = vst [vmem:[%s3 + $0xa4] sm:$0xf] %v1665
  %1794 = vst [vmem:[%s3 + $0xa8] sm:$0xf] %v1666
  %1795 = vst [vmem:[%s3 + $0xac] sm:$0xf] %v1667
  %1796 = vst [vmem:[%s3 + $0xb0] sm:$0xf] %v1668
  %1797 = vst [vmem:[%s3 + $0xb4] sm:$0xf] %v1669
  %1798 = vst [vmem:[%s3 + $0xb8] sm:$0xf] %v1670
  %1799 = vst [vmem:[%s3 + $0xbc] sm:$0xf] %v1671
  %1800 = vst [vmem:[%s3 + $0xc0] sm:$0xf] %v1672
  %1801 = vst [vmem:[%s3 + $0xc4] sm:$0xf] %v1673
  %1802 = vst [vmem:[%s3 + $0xc8] sm:$0xf] %v1674
  %1803 = vst [vmem:[%s3 + $0xcc] sm:$0xf] %v1675
  %1804 = vst [vmem:[%s3 + $0xd0] sm:$0xf] %v1676
  %1805 = vst [vmem:[%s3 + $0xd4] sm:$0xf] %v1677
  %1806 = vst [vmem:[%s3 + $0xd8] sm:$0xf] %v1678
  %1807 = vst [vmem:[%s3 + $0xdc] sm:$0xf] %v1679
  %1808 = vst [vmem:[%s3 + $0xe0] sm:$0xf] %v1680
  %1809 = vst [vmem:[%s3 + $0xe4] sm:$0xf] %v1681
  %1810 = vst [vmem:[%s3 + $0xe8] sm:$0xf] %v1682
  %1811 = vst [vmem:[%s3 + $0xec] sm:$0xf] %v1683
  %1812 = vst [vmem:[%s3 + $0xf0] sm:$0xf] %v1684
  %1813 = vst [vmem:[%s3 + $0xf4] sm:$0xf] %v1685
  %1814 = vst [vmem:[%s3 + $0xf8] sm:$0xf] %v1686
  %1815 = vst [vmem:[%s3 + $0xfc] sm:$0xf] %v1687
  // Predicated region
  $region14: #{alexnet_features1.1} parent=0 // pred_check
    _
  $region15: #{alexnet_features1.1} parent=0 // pred_check_branch
    %1817 = sbr.rel (0) target = $region17
  $region16: #{alexnet_features1.1} parent=0 // pred_region
    _
  $region17: #{alexnet_features1.1} parent=0 // pred_fallthru
    _
  // Predicated region
  $region18: #{alexnet_features1.1} parent=0 // pred_check
    _
  $region19: #{alexnet_features1.1} parent=0 // pred_check_branch
    %1819 = sbr.rel (0) target = $region21
  $region20: #{alexnet_features1.1} parent=0 // pred_region
    _
  $region21: #{alexnet_features1.1} parent=0 // pred_fallthru
    _

</llo_original>
